<compile_context>
chip_gen: v7x
topology: tpu7x:2x2x1
jax: 0.10.0
libtpu: 0.0.40
codegen_flags: <defaults>
</compile_context>

<pallas_src>
import numpy as np
import jax
import jax.numpy as jnp
from jax.experimental import pallas as pl
from jax.experimental.pallas import tpu as pltpu

WINDOW_SIZE = 11
SIGMA = 1.5


# --------------------------------------------------------------------------
# Deterministic "parameter" setup (the Gaussian window from MSSSIM.__init__)
# --------------------------------------------------------------------------
def gaussian_1d(window_size: int, sigma: float) -> np.ndarray:
    x = np.arange(window_size, dtype=np.float64)
    g = np.exp(-((x - window_size // 2) ** 2) / (2.0 * sigma ** 2))
    return (g / g.sum()).astype(np.float32)


def _pool_matrix(n: int) -> jnp.ndarray:
    # avg_pool(kernel=2, stride=2) along one axis as an (n, n//2) matrix.
    m = np.zeros((n, n // 2), dtype=np.float32)
    for j in range(n // 2):
        m[2 * j, j] = 0.5
        m[2 * j + 1, j] = 0.5
    return jnp.asarray(m)


def _conv_matrix(n: int, g: np.ndarray) -> jnp.ndarray:
    # 'valid' 1D cross-correlation with taps g as an (n, n - ws + 1) matrix.
    ws = g.shape[0]
    nout = n - ws + 1
    m = np.zeros((n, nout), dtype=np.float32)
    for u in range(nout):
        m[u:u + ws, u] = g
    return jnp.asarray(m)


# --------------------------------------------------------------------------
# Pallas kernel
# --------------------------------------------------------------------------
def _contract_last(x, m):
    # x: (..., B), m: (B, V) -> (..., V)   [flattened 2-D matmul on the MXU]
    lead = x.shape[:-1]
    y = jnp.dot(x.reshape(-1, x.shape[-1]), m, preferred_element_type=jnp.float32)
    return y.reshape(lead + (m.shape[1],))


def _msssim_kernel(c2_ref, i1_ref, i2_ref, pw_ref, cw_ref, ch_ref, out_ref, stk_ref):
    # i1_ref / i2_ref: (H, W) slice for this (batch, channel) grid step.
    H, W = i1_ref.shape
    Hp = H // 2

    pw = pw_ref[...]   # (W,  W/2)   2x2 avg-pool along W (lane axis) as matmul
    cw = cw_ref[...]   # (W/2, Wout) gaussian conv along W
    ch = ch_ref[...]   # (H/2, Hout) gaussian conv along H

    def pool(ref):
        # 2x2 avg-pool.  H axis: sublane-strided adds (no dense (H,H/2) matrix,
        # no transpose).  W axis: small matmul so the lane axis stays contiguous.
        # NOTE: strided sublane loads are cheap for 32-bit data; for packed
        # bf16 inputs a full-block cast-then-slice would avoid per-load relayout.
        ev = ref[pl.ds(0, Hp, stride=2), :].astype(jnp.float32)
        od = ref[pl.ds(1, Hp, stride=2), :].astype(jnp.float32)
        return _contract_last((ev + od) * 0.5, pw)          # (Hp, Wp)

    p1 = pool(i1_ref)
    p2 = pool(i2_ref)

    # Write the five depthwise-conv inputs straight into the (5, Hp, Wp) VMEM
    # scratch (no jnp.concatenate copy); products first so p1/p2 die early.
    stk_ref[2] = p1 * p1
    stk_ref[3] = p2 * p2
    stk_ref[4] = p1 * p2
    stk_ref[0] = p1
    stk_ref[1] = p2

    # One separable Gaussian pass for all five maps.
    stacked = stk_ref[...]                 # (5, Hp, Wp)
    t = _contract_last(stacked, cw)        # (5, Hp, Wout)
    t = jnp.swapaxes(t, -1, -2)            # (5, Wout, Hp)   -- the ONLY transpose
    conv = _contract_last(t, ch)           # (5, Wout, Hout) -- kept transposed;
                                           # the mean is permutation-invariant.

    mu1, mu2 = conv[0], conv[1]
    # Keep the E[x^2] - mu^2 cancellation in f32 (catastrophic in bf16).
    s11 = conv[2] - mu1 * mu1
    s22 = conv[3] - mu2 * mu2
    s12 = conv[4] - mu1 * mu2

    c2 = c2_ref[0]                         # scalar-prefetched (SMEM)
    v1 = 2.0 * s12 + c2
    v2 = s11 + s22 + c2

    # EUP approximate reciprocal + one Newton-Raphson step on the VPU (slack
    # slot here) -> near-exact f32 divide without a serial slow path.
    r = pl.reciprocal(v2, approx=True)
    r = r * (2.0 - v2 * r)
    partial = jnp.sum(v1 * r)

    # Lane-dense per-program partial sum (unmasked (8,128) splat store).
    out_ref[...] = jnp.broadcast_to(partial, out_ref.shape)


# --------------------------------------------------------------------------
# Wrapper
# --------------------------------------------------------------------------
def msssim_pallas(img1, img2, window_size: int = WINDOW_SIZE, val_range=None):
    N, C, H, W = img1.shape
    assert img2.shape == img1.shape
    assert H % 2 == 0 and W % 2 == 0
    Hp, Wp = H // 2, W // 2
    Hout, Wout = Hp - window_size + 1, Wp - window_size + 1
    assert Hout >= 1 and Wout >= 1, "pooled image must be >= window_size"

    g = gaussian_1d(window_size, SIGMA)
    pw = _pool_matrix(W)
    cw = _conv_matrix(Wp, g)
    ch = _conv_matrix(Hp, g)

    if val_range is not None:
        # Fast path: dynamic range known -> no extra HBM pass over img1.
        c2 = jnp.asarray([(0.03 * float(val_range)) ** 2], dtype=jnp.float32)
    else:
        # val_range=None branch: L from the *pooled* img1 extrema (matches the
        # reference, which pools before calling ssim).  Hoisted out of the
        # kernel so the grid can be tiled & parallelized; scalar-prefetched.
        p1 = jax.lax.reduce_window(img1.astype(jnp.float32), 0.0, jax.lax.add,
                                   (1, 1, 2, 2), (1, 1, 2, 2), "VALID") * 0.25
        mx, mn = jnp.max(p1), jnp.min(p1)
        L = jnp.where(mx > 128.0, 255.0, 1.0) - jnp.where(mn < -0.5, -1.0, 0.0)
        c2 = jnp.reshape((0.03 * L) ** 2, (1,)).astype(jnp.float32)

    # --- explicit VMEM budget (per grid step, C_tile = 1) -------------------
    itemsize = int(img1.dtype.itemsize)
    per_step_bytes = (
        2 * 2 * H * W * itemsize                      # two inputs, double-buffered
        + 5 * Hp * Wp * 4                             # (5, Hp, Wp) scratch
        + (2 * Hp * W + 2 * Hp * Wp) * 4              # pool temps
        + 5 * (Hp * Wout + Wout * Hp + Wout * Hout) * 4  # conv intermediates
        + 2 * (W * Wp + Wp * Wout + Hp * Hout) * 4    # band matrices (buffered)
        + 2 * 8 * 128 * 4                             # output splat
    )
    vmem_limit = int(min(max(2 * per_step_bytes, 32 << 20), 64 << 20))

    # --- advisory cost estimate for the XLA scheduler ------------------------
    flops_per_step = (
        2 * 2 * Hp * W * Wp            # pool matmuls (two images)
        + 2 * 5 * Hp * Wp * Wout       # W-axis gaussian conv
        + 2 * 5 * Wout * Hp * Hout     # H-axis gaussian conv
        + 16 * Hp * Wp                 # pool adds + products
        + 14 * Wout * Hout             # ssim map elementwise
    )
    cost = pl.CostEstimate(
        flops=int(N * C * flops_per_step),
        transcendentals=int(N * C * Wout * Hout),
        bytes_accessed=int(2 * N * C * H * W * itemsize + N * C * 8 * 128 * 4),
    )

    # NOTE: inputs are passed in their native dtype (no wrapper-side f32 copy);
    # the kernel casts after the strided pool loads.
    partials = pl.pallas_call(
        _msssim_kernel,
        out_shape=jax.ShapeDtypeStruct((N, C, 8, 128), jnp.float32),
        grid_spec=pltpu.PrefetchScalarGridSpec(
            num_scalar_prefetch=1,
            grid=(N, C),
            in_specs=[
                # One (H, W) channel slice per grid step (double-buffered).
                pl.BlockSpec((None, None, H, W), lambda n, c, c2s: (n, c, 0, 0)),
                pl.BlockSpec((None, None, H, W), lambda n, c, c2s: (n, c, 0, 0)),
                pl.BlockSpec((W, Wp), lambda n, c, c2s: (0, 0)),
                pl.BlockSpec((Wp, Wout), lambda n, c, c2s: (0, 0)),
                pl.BlockSpec((Hp, Hout), lambda n, c, c2s: (0, 0)),
            ],
            out_specs=pl.BlockSpec((None, None, 8, 128),
                                   lambda n, c, c2s: (n, c, 0, 0)),
            scratch_shapes=[pltpu.VMEM((5, Hp, Wp), jnp.float32)],
        ),
        compiler_params=pltpu.CompilerParams(
            dimension_semantics=("parallel", "parallel"),
            vmem_limit_bytes=vmem_limit,
        ),
        cost_estimate=cost,
    )(c2, img1, img2, pw, cw, ch)

    total = N * C * Hout * Wout
    return jnp.sum(partials[:, :, 0, 0]) / total


# --------------------------------------------------------------------------
# Pure-JAX reference (mirrors the PyTorch module semantics)
# --------------------------------------------------------------------------
def msssim_ref(img1, img2, window_size: int = WINDOW_SIZE):
    N, C, H, W = img1.shape

    def pool(x):
        s = jax.lax.reduce_window(x, 0.0, jax.lax.add,
                                  (1, 1, 2, 2), (1, 1, 2, 2), "VALID")
        return s / 4.0

    p1, p2 = pool(img1), pool(img2)

    g = jnp.asarray(gaussian_1d(window_size, SIGMA))
    w2 = jnp.outer(g, g)
    w = jnp.broadcast_to(w2, (C, 1, window_size, window_size))

    def conv(x):
        return jax.lax.conv_general_dilated(
            x, w, (1, 1), "VALID",
            dimension_numbers=("NCHW", "OIHW", "NCHW"),
            feature_group_count=C)

    mu1, mu2 = conv(p1), conv(p2)
    s11 = conv(p1 * p1) - mu1 * mu1
    s22 = conv(p2 * p2) - mu2 * mu2
    s12 = conv(p1 * p2) - mu1 * mu2

    mx, mn = jnp.max(p1), jnp.min(p1)
    L = jnp.where(mx > 128.0, 255.0, 1.0) - jnp.where(mn < -0.5, -1.0, 0.0)
    C2 = (0.03 * L) ** 2
    return jnp.mean((2.0 * s12 + C2) / (s11 + s22 + C2))


if __name__ == "__main__":
    key = jax.random.PRNGKey(0)
    k1, k2 = jax.random.split(key)
    # batch=2, channels=3, spatial=32 (pooled 16x16 >= the 11x11 window).
    img1 = jax.random.normal(k1, (2, 3, 32, 32), dtype=jnp.float32)
    img2 = jax.random.normal(k2, (2, 3, 32, 32), dtype=jnp.float32)

    out = jax.block_until_ready(msssim_pallas(img1, img2))
    ref = jax.block_until_ready(msssim_ref(img1, img2))

    assert np.allclose(np.asarray(out), np.asarray(ref), rtol=2e-3, atol=2e-3), \
        (float(out), float(ref))
    print("KERNEL_OK")
</pallas_src>

<mosaic_0001>
module attributes {stable_mosaic.version = 11 : i64} {
  func.func @_msssim_kernel(%arg0: i32, %arg1: i32, %arg2: memref<1xf32, #tpu.memory_space<smem>>, %arg3: memref<1x1x32x32xf32, #tpu.memory_space<vmem>>, %arg4: memref<1x1x32x32xf32, #tpu.memory_space<vmem>>, %arg5: memref<32x16xf32, #tpu.memory_space<vmem>>, %arg6: memref<16x6xf32, #tpu.memory_space<vmem>>, %arg7: memref<16x6xf32, #tpu.memory_space<vmem>>, %arg8: memref<1x1x8x128xf32, #tpu.memory_space<vmem>>, %arg9: memref<5x16x16xf32, #tpu.memory_space<vmem>>) attributes {dimension_semantics = [#tpu.dimension_semantics<parallel>, #tpu.dimension_semantics<parallel>], iteration_bounds = array<i64: 2, 3>, scalar_prefetch = 1 : i64, scratch_operands = 1 : i64, tpu.core_type = #tpu.core_type<tc>, window_params = [{transform_indices = @transform_0, window_bounds = array<i64: 1, 1, 32, 32>}, {transform_indices = @transform_1, window_bounds = array<i64: 1, 1, 32, 32>}, {pipeline_mode = #tpu.pipeline_mode<synchronous>, transform_indices = @transform_2, window_bounds = array<i64: 32, 16>}, {pipeline_mode = #tpu.pipeline_mode<synchronous>, transform_indices = @transform_3, window_bounds = array<i64: 16, 6>}, {pipeline_mode = #tpu.pipeline_mode<synchronous>, transform_indices = @transform_4, window_bounds = array<i64: 16, 6>}, {transform_indices = @transform_5, window_bounds = array<i64: 1, 1, 8, 128>}]} {
    %c0 = arith.constant 0 : index
    %c0_0 = arith.constant 0 : index
    %0 = vector.load %arg5[%c0, %c0_0] : memref<32x16xf32, #tpu.memory_space<vmem>>, vector<32x16xf32>
    %c0_1 = arith.constant 0 : index
    %c0_2 = arith.constant 0 : index
    %1 = vector.load %arg6[%c0_1, %c0_2] : memref<16x6xf32, #tpu.memory_space<vmem>>, vector<16x6xf32>
    %c0_3 = arith.constant 0 : index
    %c0_4 = arith.constant 0 : index
    %2 = vector.load %arg7[%c0_3, %c0_4] : memref<16x6xf32, #tpu.memory_space<vmem>>, vector<16x6xf32>
    %c0_5 = arith.constant 0 : index
    %c0_6 = arith.constant 0 : index
    %c0_7 = arith.constant 0 : index
    %c0_8 = arith.constant 0 : index
    %3 = tpu.strided_load %arg3[%c0_5, %c0_6, %c0_7, %c0_8] {strides = array<i32: 1, 1, 2, 1>} : memref<1x1x32x32xf32, #tpu.memory_space<vmem>>, vector<1x1x16x32xf32>
    %4 = vector.shape_cast %3 : vector<1x1x16x32xf32> to vector<16x32xf32>
    %c0_9 = arith.constant 0 : index
    %c0_10 = arith.constant 0 : index
    %c1 = arith.constant 1 : index
    %c0_11 = arith.constant 0 : index
    %5 = tpu.strided_load %arg3[%c0_9, %c0_10, %c1, %c0_11] {strides = array<i32: 1, 1, 2, 1>} : memref<1x1x32x32xf32, #tpu.memory_space<vmem>>, vector<1x1x16x32xf32>
    %6 = vector.shape_cast %5 : vector<1x1x16x32xf32> to vector<16x32xf32>
    %7 = arith.addf %4, %6 : vector<16x32xf32>
    %cst = arith.constant 5.000000e-01 : f32
    %8 = vector.broadcast %cst : f32 to vector<16x32xf32>
    %9 = arith.mulf %7, %8 : vector<16x32xf32>
    %cst_12 = arith.constant dense<0.000000e+00> : vector<16x16xf32>
    %10 = tpu.matmul %9, %0, %cst_12 {dimension_numbers = #tpu.dot_dimension_numbers<[1], [0], [0], [1], [0, 0, 1, 1], [], []>} : vector<16x32xf32>, vector<32x16xf32>, vector<16x16xf32> -> vector<16x16xf32>
    %c0_13 = arith.constant 0 : index
    %c0_14 = arith.constant 0 : index
    %c0_15 = arith.constant 0 : index
    %c0_16 = arith.constant 0 : index
    %11 = tpu.strided_load %arg4[%c0_13, %c0_14, %c0_15, %c0_16] {strides = array<i32: 1, 1, 2, 1>} : memref<1x1x32x32xf32, #tpu.memory_space<vmem>>, vector<1x1x16x32xf32>
    %12 = vector.shape_cast %11 : vector<1x1x16x32xf32> to vector<16x32xf32>
    %c0_17 = arith.constant 0 : index
    %c0_18 = arith.constant 0 : index
    %c1_19 = arith.constant 1 : index
    %c0_20 = arith.constant 0 : index
    %13 = tpu.strided_load %arg4[%c0_17, %c0_18, %c1_19, %c0_20] {strides = array<i32: 1, 1, 2, 1>} : memref<1x1x32x32xf32, #tpu.memory_space<vmem>>, vector<1x1x16x32xf32>
    %14 = vector.shape_cast %13 : vector<1x1x16x32xf32> to vector<16x32xf32>
    %15 = arith.addf %12, %14 : vector<16x32xf32>
    %cst_21 = arith.constant 5.000000e-01 : f32
    %16 = vector.broadcast %cst_21 : f32 to vector<16x32xf32>
    %17 = arith.mulf %15, %16 : vector<16x32xf32>
    %cst_22 = arith.constant dense<0.000000e+00> : vector<16x16xf32>
    %18 = tpu.matmul %17, %0, %cst_22 {dimension_numbers = #tpu.dot_dimension_numbers<[1], [0], [0], [1], [0, 0, 1, 1], [], []>} : vector<16x32xf32>, vector<32x16xf32>, vector<16x16xf32> -> vector<16x16xf32>
    %19 = arith.mulf %10, %10 : vector<16x16xf32>
    %c2 = arith.constant 2 : index
    %c0_23 = arith.constant 0 : index
    %c0_24 = arith.constant 0 : index
    %20 = vector.load %arg9[%c2, %c0_23, %c0_24] : memref<5x16x16xf32, #tpu.memory_space<vmem>>, vector<1x16x16xf32>
    %21 = vector.shape_cast %20 : vector<1x16x16xf32> to vector<16x16xf32>
    %22 = vector.shape_cast %19 : vector<16x16xf32> to vector<1x16x16xf32>
    tpu.vector_store %arg9[%c2, %c0_23, %c0_24], %22 {strides = array<i32>} : memref<5x16x16xf32, #tpu.memory_space<vmem>>, vector<1x16x16xf32>,
    %23 = arith.mulf %18, %18 : vector<16x16xf32>
    %c3 = arith.constant 3 : index
    %c0_25 = arith.constant 0 : index
    %c0_26 = arith.constant 0 : index
    %24 = vector.load %arg9[%c3, %c0_25, %c0_26] : memref<5x16x16xf32, #tpu.memory_space<vmem>>, vector<1x16x16xf32>
    %25 = vector.shape_cast %24 : vector<1x16x16xf32> to vector<16x16xf32>
    %26 = vector.shape_cast %23 : vector<16x16xf32> to vector<1x16x16xf32>
    tpu.vector_store %arg9[%c3, %c0_25, %c0_26], %26 {strides = array<i32>} : memref<5x16x16xf32, #tpu.memory_space<vmem>>, vector<1x16x16xf32>,
    %27 = arith.mulf %10, %18 : vector<16x16xf32>
    %c4 = arith.constant 4 : index
    %c0_27 = arith.constant 0 : index
    %c0_28 = arith.constant 0 : index
    %28 = vector.load %arg9[%c4, %c0_27, %c0_28] : memref<5x16x16xf32, #tpu.memory_space<vmem>>, vector<1x16x16xf32>
    %29 = vector.shape_cast %28 : vector<1x16x16xf32> to vector<16x16xf32>
    %30 = vector.shape_cast %27 : vector<16x16xf32> to vector<1x16x16xf32>
    tpu.vector_store %arg9[%c4, %c0_27, %c0_28], %30 {strides = array<i32>} : memref<5x16x16xf32, #tpu.memory_space<vmem>>, vector<1x16x16xf32>,
    %c0_29 = arith.constant 0 : index
    %c0_30 = arith.constant 0 : index
    %c0_31 = arith.constant 0 : index
    %31 = vector.load %arg9[%c0_29, %c0_30, %c0_31] : memref<5x16x16xf32, #tpu.memory_space<vmem>>, vector<1x16x16xf32>
    %32 = vector.shape_cast %31 : vector<1x16x16xf32> to vector<16x16xf32>
    %33 = vector.shape_cast %10 : vector<16x16xf32> to vector<1x16x16xf32>
    tpu.vector_store %arg9[%c0_29, %c0_30, %c0_31], %33 {strides = array<i32>} : memref<5x16x16xf32, #tpu.memory_space<vmem>>, vector<1x16x16xf32>,
    %c1_32 = arith.constant 1 : index
    %c0_33 = arith.constant 0 : index
    %c0_34 = arith.constant 0 : index
    %34 = vector.load %arg9[%c1_32, %c0_33, %c0_34] : memref<5x16x16xf32, #tpu.memory_space<vmem>>, vector<1x16x16xf32>
    %35 = vector.shape_cast %34 : vector<1x16x16xf32> to vector<16x16xf32>
    %36 = vector.shape_cast %18 : vector<16x16xf32> to vector<1x16x16xf32>
    tpu.vector_store %arg9[%c1_32, %c0_33, %c0_34], %36 {strides = array<i32>} : memref<5x16x16xf32, #tpu.memory_space<vmem>>, vector<1x16x16xf32>,
    %c0_35 = arith.constant 0 : index
    %c0_36 = arith.constant 0 : index
    %c0_37 = arith.constant 0 : index
    %37 = vector.load %arg9[%c0_35, %c0_36, %c0_37] : memref<5x16x16xf32, #tpu.memory_space<vmem>>, vector<5x16x16xf32>
    %38 = vector.shape_cast %37 : vector<5x16x16xf32> to vector<80x16xf32>
    %cst_38 = arith.constant dense<0.000000e+00> : vector<80x6xf32>
    %39 = tpu.matmul %38, %1, %cst_38 {dimension_numbers = #tpu.dot_dimension_numbers<[1], [0], [0], [1], [0, 0, 1, 1], [], []>} : vector<80x16xf32>, vector<16x6xf32>, vector<80x6xf32> -> vector<80x6xf32>
    %40 = vector.shape_cast %39 : vector<80x6xf32> to vector<5x16x6xf32>
    %41 = tpu.transpose %40, [0, 2, 1] : vector<5x16x6xf32> -> vector<5x6x16xf32>
    %42 = vector.shape_cast %41 : vector<5x6x16xf32> to vector<30x16xf32>
    %cst_39 = arith.constant dense<0.000000e+00> : vector<30x6xf32>
    %43 = tpu.matmul %42, %2, %cst_39 {dimension_numbers = #tpu.dot_dimension_numbers<[1], [0], [0], [1], [0, 0, 1, 1], [], []>} : vector<30x16xf32>, vector<16x6xf32>, vector<30x6xf32> -> vector<30x6xf32>
    %44 = vector.shape_cast %43 : vector<30x6xf32> to vector<5x6x6xf32>
    %45 = vector.extract_strided_slice %44 {offsets = [0, 0, 0], sizes = [1, 6, 6], strides = [1, 1, 1]} : vector<5x6x6xf32> to vector<1x6x6xf32>
    %46 = vector.shape_cast %45 : vector<1x6x6xf32> to vector<6x6xf32>
    %47 = vector.extract_strided_slice %44 {offsets = [1, 0, 0], sizes = [1, 6, 6], strides = [1, 1, 1]} : vector<5x6x6xf32> to vector<1x6x6xf32>
    %48 = vector.shape_cast %47 : vector<1x6x6xf32> to vector<6x6xf32>
    %49 = vector.extract_strided_slice %44 {offsets = [2, 0, 0], sizes = [1, 6, 6], strides = [1, 1, 1]} : vector<5x6x6xf32> to vector<1x6x6xf32>
    %50 = vector.shape_cast %49 : vector<1x6x6xf32> to vector<6x6xf32>
    %51 = arith.mulf %46, %46 : vector<6x6xf32>
    %52 = arith.subf %50, %51 : vector<6x6xf32>
    %53 = vector.extract_strided_slice %44 {offsets = [3, 0, 0], sizes = [1, 6, 6], strides = [1, 1, 1]} : vector<5x6x6xf32> to vector<1x6x6xf32>
    %54 = vector.shape_cast %53 : vector<1x6x6xf32> to vector<6x6xf32>
    %55 = arith.mulf %48, %48 : vector<6x6xf32>
    %56 = arith.subf %54, %55 : vector<6x6xf32>
    %57 = vector.extract_strided_slice %44 {offsets = [4, 0, 0], sizes = [1, 6, 6], strides = [1, 1, 1]} : vector<5x6x6xf32> to vector<1x6x6xf32>
    %58 = vector.shape_cast %57 : vector<1x6x6xf32> to vector<6x6xf32>
    %59 = arith.mulf %46, %48 : vector<6x6xf32>
    %60 = arith.subf %58, %59 : vector<6x6xf32>
    %c0_40 = arith.constant 0 : index
    %61 = memref.load %arg2[%c0_40] : memref<1xf32, #tpu.memory_space<smem>>
    %cst_41 = arith.constant 2.000000e+00 : f32
    %62 = vector.broadcast %cst_41 : f32 to vector<6x6xf32>
    %63 = arith.mulf %62, %60 : vector<6x6xf32>
    %64 = vector.broadcast %61 : f32 to vector<6x6xf32>
    %65 = arith.addf %63, %64 : vector<6x6xf32>
    %66 = arith.addf %52, %56 : vector<6x6xf32>
    %67 = vector.broadcast %61 : f32 to vector<6x6xf32>
    %68 = arith.addf %66, %67 : vector<6x6xf32>
    %69 = tpu.reciprocal %68 {approx = true} : vector<6x6xf32> -> vector<6x6xf32>
    %70 = arith.mulf %68, %69 : vector<6x6xf32>
    %cst_42 = arith.constant 2.000000e+00 : f32
    %71 = vector.broadcast %cst_42 : f32 to vector<6x6xf32>
    %72 = arith.subf %71, %70 : vector<6x6xf32>
    %73 = arith.mulf %69, %72 : vector<6x6xf32>
    %74 = arith.mulf %65, %73 : vector<6x6xf32>
    %75 = vector.shape_cast %74 : vector<6x6xf32> to vector<1x6x6xf32>
    %cst_43 = arith.constant dense<0.000000e+00> : vector<1xf32>
    %76 = vector.multi_reduction <add>, %75, %cst_43 [1, 2] : vector<1x6x6xf32> to vector<1xf32>
    %77 = vector.shape_cast %76 : vector<1xf32> to vector<1x1x1xf32>
    %78 = vector.extract %77[0, 0, 0] : f32 from vector<1x1x1xf32>
    %79 = vector.broadcast %78 : f32 to vector<8x128xf32>
    %c0_44 = arith.constant 0 : index
    %c0_45 = arith.constant 0 : index
    %c0_46 = arith.constant 0 : index
    %c0_47 = arith.constant 0 : index
    %80 = vector.load %arg8[%c0_44, %c0_45, %c0_46, %c0_47] : memref<1x1x8x128xf32, #tpu.memory_space<vmem>>, vector<1x1x8x128xf32>
    %81 = vector.shape_cast %80 : vector<1x1x8x128xf32> to vector<8x128xf32>
    %82 = vector.shape_cast %79 : vector<8x128xf32> to vector<1x1x8x128xf32>
    tpu.vector_store %arg8[%c0_44, %c0_45, %c0_46, %c0_47], %82 {strides = array<i32>} : memref<1x1x8x128xf32, #tpu.memory_space<vmem>>, vector<1x1x8x128xf32>,
    return
  }
  func.func @transform_0(%arg0: i32, %arg1: i32, %arg2: memref<1xf32, #tpu.memory_space<smem>>) -> (i32, i32, i32, i32) {
    %c0_i32 = arith.constant 0 : i32
    %c0_i32_0 = arith.constant 0 : i32
    %c0_i32_1 = arith.constant 0 : i32
    return %arg0, %arg1, %c0_i32, %c0_i32_0 : i32, i32, i32, i32
  }
  func.func @transform_1(%arg0: i32, %arg1: i32, %arg2: memref<1xf32, #tpu.memory_space<smem>>) -> (i32, i32, i32, i32) {
    %c0_i32 = arith.constant 0 : i32
    %c0_i32_0 = arith.constant 0 : i32
    %c0_i32_1 = arith.constant 0 : i32
    return %arg0, %arg1, %c0_i32, %c0_i32_0 : i32, i32, i32, i32
  }
  func.func @transform_2(%arg0: i32, %arg1: i32, %arg2: memref<1xf32, #tpu.memory_space<smem>>) -> (i32, i32) {
    %c0_i32 = arith.constant 0 : i32
    %c0_i32_0 = arith.constant 0 : i32
    %c0_i32_1 = arith.constant 0 : i32
    return %c0_i32, %c0_i32_0 : i32, i32
  }
  func.func @transform_3(%arg0: i32, %arg1: i32, %arg2: memref<1xf32, #tpu.memory_space<smem>>) -> (i32, i32) {
    %c0_i32 = arith.constant 0 : i32
    %c0_i32_0 = arith.constant 0 : i32
    %c0_i32_1 = arith.constant 0 : i32
    return %c0_i32, %c0_i32_0 : i32, i32
  }
  func.func @transform_4(%arg0: i32, %arg1: i32, %arg2: memref<1xf32, #tpu.memory_space<smem>>) -> (i32, i32) {
    %c0_i32 = arith.constant 0 : i32
    %c0_i32_0 = arith.constant 0 : i32
    %c0_i32_1 = arith.constant 0 : i32
    return %c0_i32, %c0_i32_0 : i32, i32
  }
  func.func @transform_5(%arg0: i32, %arg1: i32, %arg2: memref<1xf32, #tpu.memory_space<smem>>) -> (i32, i32, i32, i32) {
    %c0_i32 = arith.constant 0 : i32
    %c0_i32_0 = arith.constant 0 : i32
    %c0_i32_1 = arith.constant 0 : i32
    return %arg0, %arg1, %c0_i32, %c0_i32_0 : i32, i32, i32, i32
  }
}

</mosaic_0001>

<llo_original>
// kernel: tpu_custom_call.1
$region0: #{tpu_custom_call.1}
  #allocation0 [shape = 'u32[]', space=smem, size = 0x4, offset = 0x4, fixed_abs, tag = 'smem constant byte address 0x4 - core index']
  #allocation1 [shape = 'u32[144,128]{1,0:T(1,128)}', space=vmem, size = 0x12000, scoped, tag = 'internal scratch']
  #allocation2 [shape = 'f32[5,16,16]{2,1,0:T(8,128)}', space=vmem, size = 0xa000, scoped, tag = 'scratch operand']
  #allocation3 [shape = 's32[1]{0}', space=sflag, size = 0x4, scoped, tag = 'scoped memory for tpu_custom_call.1']
  #allocation4 [shape = 'f32[1]{0:T(128)S(6)}', space=smem, size = 0x200, scoped, tag = 'prefetched SMEM operand 0']
  %s0 = inlined_call_operand.<no memory space> [shape: f32[1], index: 0, kind: input, shape index: {}]
  %s1 = inlined_call_operand.hbm [shape: f32[2,3,32,32], index: 1, kind: input, shape index: {}]
  %s2 = inlined_call_operand.hbm [shape: f32[2,3,32,32], index: 2, kind: input, shape index: {}]
  %s3 = inlined_call_operand.vmem [shape: f32[32,16], index: 3, kind: input, shape index: {}]
  %s4 = inlined_call_operand.vmem [shape: f32[16,6], index: 4, kind: input, shape index: {}]
  %s5 = inlined_call_operand.vmem [shape: f32[16,6], index: 5, kind: input, shape index: {}]
  %s6 = inlined_call_operand.hbm [shape: f32[2,3,8,128], index: 6, kind: output, shape index: {}]
  %s7 = sld [smem:[#allocation0]]
  $region61: #{tpu_custom_call.1} parent=0
    _
  %s9 = ssub.s32 1, %s7
  %s10 = scalar_select 0, %s9, %s7
  %11 = sst [smem:[#allocation4]] %s0
  $region1: #{tpu_custom_call.1} parent=0
    #allocation5 [shape = 'u8[32768]{0}', space=vmem, size = 0x8000, scoped, tag = 'input window, operand 1']
    #allocation6 [shape = 's32[2]{0}', space=sflag, size = 0x8, scoped, tag = 'scoped memory for tpu_custom_call.1']
    #allocation7 [shape = 's32[2]{0}', space=sflag, size = 0x8, scoped, tag = 'scoped memory for tpu_custom_call.1']
    #allocation8 [shape = 'u8[32768]{0}', space=vmem, size = 0x8000, scoped, tag = 'input window, operand 2']
    #allocation9 [shape = 's32[2]{0}', space=sflag, size = 0x8, scoped, tag = 'scoped memory for tpu_custom_call.1']
    #allocation10 [shape = 'u8[8192]{0}', space=vmem, size = 0x2000, scoped, tag = 'output window, operand 0']
    %12 = vsyncpa [#allocation6], 0
    %s13 = scalar_lea.sflag [#allocation6], 1
    %14 = vsyncpa %s13, 0
    %15 = vsyncpa [#allocation9], 0
    %s16 = scalar_lea.sflag [#allocation9], 1
    %17 = vsyncpa %s16, 0
    %18 = vsyncpa [#allocation7], 0
    %s19 = scalar_lea.sflag [#allocation7], 1
    %20 = vsyncpa %s19, 0
    loop: start=0, step=1, limit=8
    $region2: #{tpu_custom_call.1} parent=1 // loop_pre_header
      _
    $region3: #{tpu_custom_call.1} parent=1 // loop_header
      %s22 = sphi 0, %s26
      %p23 = scmp.ge.s32.totalorder %s22, 8
      %s29 = sphi 0, %s41
      %s30 = sphi 0, %s37
      %s31 = sphi 0, %s29
      %s32 = sphi 0, %s30
      %s33 = sphi 0, %s31
      %s34 = sphi 0, %s32
      %s46 = sphi 0, %s48
      %s49 = sphi 0, %s46
      %s50 = sphi 0, %s49
      %s66 = sphi 0, %s50
      %s74 = sphi 0, %s76
      %s77 = sphi 0, %s74
      %s78 = sphi 0, %s77
      %s94 = sphi 0, %s78
      %s98 = sphi 0, %s98
      %s100 = sphi 0, %s98
      %s101 = sphi 0, %s100
      %s115 = sphi 0, %s101
      %s119 = sphi 0, %s119
      %s121 = sphi 0, %s119
      %s122 = sphi 0, %s121
      %s136 = sphi 0, %s122
      %s140 = sphi 0, %s140
      %s142 = sphi 0, %s140
      %s143 = sphi 0, %s142
      %s157 = sphi 0, %s143
      %s165 = sphi 0, %s167
      %s168 = sphi 0, %s165
      %s169 = sphi 0, %s168
      %s185 = sphi 0, %s169
    $region4: #{tpu_custom_call.1} parent=1 // loop_header_branch
      %25 = sbr.rel (%p23) target = $region8
    $region5: #{tpu_custom_call.1} parent=1 // loop_body
      %s27 = ssub.s32 %s22, 1
      %s28 = ssub.s32 %s22, 2
      %s35 = sadd.s32 1, %s30
      %p36 = scmp.ge.s32.totalorder %s35, 3
      %s37 = scalar_select %p36, 0, %s35
      %s38 = sadd.s32 1, %s29
      %s39 = scalar_select %p36, %s38, %s29
      %p40 = scmp.ge.s32.totalorder %s39, 2
      %s41 = scalar_select %p40, 0, %s39
      %s42 = ssub.s32 %s29, %s41
      %s43 = ssub.s32 %s30, %s37
      %s44 = sor.u32 %s42, %s43
      %p45 = scmp.eq.s32.totalorder %s44, 0
      %s47 = sadd.s32 %s46, 1
      %s48 = scalar_select %p45, %s46, %s47
      %p51 = pneg %p45
      %p52 = scmp.eq.s32.totalorder %s22, 5
      %p53 = por %p51, %p52
      %p54 = scmp.ne.s32.totalorder %s46, %s49
      %p55 = scmp.eq.s32.totalorder %s22, 0
      %p56 = por %p54, %p55
      %p57 = scmp.ne.s32.totalorder %s46, %s49
      %p58 = scmp.eq.s32.totalorder %s27, 5
      %p59 = por %p57, %p58
      %p60 = scmp.ne.s32.totalorder %s49, %s50
      %p61 = scmp.eq.s32.totalorder %s27, 0
      %p62 = por %p60, %p61
      %p63 = scmp.ne.s32.totalorder %s49, %s50
      %p64 = scmp.eq.s32.totalorder %s28, 5
      %p65 = por %p63, %p64
      %p67 = scmp.ne.s32.totalorder %s50, %s66
      %p68 = scmp.eq.s32.totalorder %s28, 0
      %p69 = por %p67, %p68
      %s70 = ssub.s32 %s29, %s41
      %s71 = ssub.s32 %s30, %s37
      %s72 = sor.u32 %s70, %s71
      %p73 = scmp.eq.s32.totalorder %s72, 0
      %s75 = sadd.s32 %s74, 1
      %s76 = scalar_select %p73, %s74, %s75
      %p79 = pneg %p73
      %p80 = scmp.eq.s32.totalorder %s22, 5
      %p81 = por %p79, %p80
      %p82 = scmp.ne.s32.totalorder %s74, %s77
      %p83 = scmp.eq.s32.totalorder %s22, 0
      %p84 = por %p82, %p83
      %p85 = scmp.ne.s32.totalorder %s74, %s77
      %p86 = scmp.eq.s32.totalorder %s27, 5
      %p87 = por %p85, %p86
      %p88 = scmp.ne.s32.totalorder %s77, %s78
      %p89 = scmp.eq.s32.totalorder %s27, 0
      %p90 = por %p88, %p89
      %p91 = scmp.ne.s32.totalorder %s77, %s78
      %p92 = scmp.eq.s32.totalorder %s28, 5
      %p93 = por %p91, %p92
      %p95 = scmp.ne.s32.totalorder %s78, %s94
      %p96 = scmp.eq.s32.totalorder %s28, 0
      %p97 = por %p95, %p96
      %s99 = sadd.s32 %s98, 1
      %p102 = scmp.eq.s32.totalorder %s22, 5
      %p103 = scmp.ne.s32.totalorder %s98, %s100
      %p104 = scmp.eq.s32.totalorder %s22, 0
      %p105 = por %p103, %p104
      %p106 = scmp.ne.s32.totalorder %s98, %s100
      %p107 = scmp.eq.s32.totalorder %s27, 5
      %p108 = por %p106, %p107
      %p109 = scmp.ne.s32.totalorder %s100, %s101
      %p110 = scmp.eq.s32.totalorder %s27, 0
      %p111 = por %p109, %p110
      %p112 = scmp.ne.s32.totalorder %s100, %s101
      %p113 = scmp.eq.s32.totalorder %s28, 5
      %p114 = por %p112, %p113
      %p116 = scmp.ne.s32.totalorder %s101, %s115
      %p117 = scmp.eq.s32.totalorder %s28, 0
      %p118 = por %p116, %p117
      %s120 = sadd.s32 %s119, 1
      %p123 = scmp.eq.s32.totalorder %s22, 5
      %p124 = scmp.ne.s32.totalorder %s119, %s121
      %p125 = scmp.eq.s32.totalorder %s22, 0
      %p126 = por %p124, %p125
      %p127 = scmp.ne.s32.totalorder %s119, %s121
      %p128 = scmp.eq.s32.totalorder %s27, 5
      %p129 = por %p127, %p128
      %p130 = scmp.ne.s32.totalorder %s121, %s122
      %p131 = scmp.eq.s32.totalorder %s27, 0
      %p132 = por %p130, %p131
      %p133 = scmp.ne.s32.totalorder %s121, %s122
      %p134 = scmp.eq.s32.totalorder %s28, 5
      %p135 = por %p133, %p134
      %p137 = scmp.ne.s32.totalorder %s122, %s136
      %p138 = scmp.eq.s32.totalorder %s28, 0
      %p139 = por %p137, %p138
      %s141 = sadd.s32 %s140, 1
      %p144 = scmp.eq.s32.totalorder %s22, 5
      %p145 = scmp.ne.s32.totalorder %s140, %s142
      %p146 = scmp.eq.s32.totalorder %s22, 0
      %p147 = por %p145, %p146
      %p148 = scmp.ne.s32.totalorder %s140, %s142
      %p149 = scmp.eq.s32.totalorder %s27, 5
      %p150 = por %p148, %p149
      %p151 = scmp.ne.s32.totalorder %s142, %s143
      %p152 = scmp.eq.s32.totalorder %s27, 0
      %p153 = por %p151, %p152
      %p154 = scmp.ne.s32.totalorder %s142, %s143
      %p155 = scmp.eq.s32.totalorder %s28, 5
      %p156 = por %p154, %p155
      %p158 = scmp.ne.s32.totalorder %s143, %s157
      %p159 = scmp.eq.s32.totalorder %s28, 0
      %p160 = por %p158, %p159
      %s161 = ssub.s32 %s29, %s41
      %s162 = ssub.s32 %s30, %s37
      %s163 = sor.u32 %s161, %s162
      %p164 = scmp.eq.s32.totalorder %s163, 0
      %s166 = sadd.s32 %s165, 1
      %s167 = scalar_select %p164, %s165, %s166
      %p170 = pneg %p164
      %p171 = scmp.eq.s32.totalorder %s22, 5
      %p172 = por %p170, %p171
      %p173 = scmp.ne.s32.totalorder %s165, %s168
      %p174 = scmp.eq.s32.totalorder %s22, 0
      %p175 = por %p173, %p174
      %p176 = scmp.ne.s32.totalorder %s165, %s168
      %p177 = scmp.eq.s32.totalorder %s27, 5
      %p178 = por %p176, %p177
      %p179 = scmp.ne.s32.totalorder %s168, %s169
      %p180 = scmp.eq.s32.totalorder %s27, 0
      %p181 = por %p179, %p180
      %p182 = scmp.ne.s32.totalorder %s168, %s169
      %p183 = scmp.eq.s32.totalorder %s28, 5
      %p184 = por %p182, %p183
      %p186 = scmp.ne.s32.totalorder %s169, %s185
      %p187 = scmp.eq.s32.totalorder %s28, 0
      %p188 = por %p186, %p187
      %p189 = scmp.le.s32.totalorder 1, %s22
      %p190 = scmp.lt.s32.totalorder %s22, 7
      %p191 = pnand %p189, %p190
      %p192 = pneg %p191
      // Predicated region
      $region9: #{tpu_custom_call.1} parent=5 // pred_check
        _
      $region10: #{tpu_custom_call.1} parent=5 // pred_check_branch
        %194 = sbr.rel (%p191) target = $region12
      $region11: #{tpu_custom_call.1} parent=5 // pred_region
        %s195 = ssub.s32 %s22, 1
        // Predicated region
        $region13: #{tpu_custom_call.1} parent=11 // pred_check
          %p196 = pneg %p111
        $region14: #{tpu_custom_call.1} parent=11 // pred_check_branch
          %198 = sbr.rel (%p196) target = $region16
        $region15: #{tpu_custom_call.1} parent=11 // pred_region
          _
        $region16: #{tpu_custom_call.1} parent=11 // pred_fallthru
          _
        // Predicated region
        $region17: #{tpu_custom_call.1} parent=11 // pred_check
          %p199 = pneg %p132
        $region18: #{tpu_custom_call.1} parent=11 // pred_check_branch
          %201 = sbr.rel (%p199) target = $region20
        $region19: #{tpu_custom_call.1} parent=11 // pred_region
          _
        $region20: #{tpu_custom_call.1} parent=11 // pred_fallthru
          _
        // Predicated region
        $region21: #{tpu_custom_call.1} parent=11 // pred_check
          %p202 = pneg %p153
        $region22: #{tpu_custom_call.1} parent=11 // pred_check_branch
          %204 = sbr.rel (%p202) target = $region24
        $region23: #{tpu_custom_call.1} parent=11 // pred_region
          _
        $region24: #{tpu_custom_call.1} parent=11 // pred_fallthru
          _
      $region12: #{tpu_custom_call.1} parent=5 // pred_fallthru
        _
      %p205 = scmp.lt.s32.totalorder %s22, 6
      // Predicated region
      $region25: #{tpu_custom_call.1} parent=5 // pred_check
        %p206 = pneg %p205
      $region26: #{tpu_custom_call.1} parent=5 // pred_check_branch
        %208 = sbr.rel (%p206) target = $region28
      $region27: #{tpu_custom_call.1} parent=5 // pred_region
        // Predicated region
        $region29: #{tpu_custom_call.1} parent=27 // pred_check
          %p209 = pneg %p56
        $region30: #{tpu_custom_call.1} parent=27 // pred_check_branch
          %211 = sbr.rel (%p209) target = $region32
        $region31: #{tpu_custom_call.1} parent=27 // pred_region
          %s212 = sand.u32 %s46, 1
          %s213 = scalar_lea.sflag [#allocation6], %s212
          %s214 = sand.u32 %s46, 1
          %s215 = smul.addr %s214, 32
          %s216 = scalar_lea.vmem [#allocation5], %s215
          %s218 = ssub.s32 512, 512
          %219 = vsyncadd %s213, %s218
          %s220 = smul.addr %s30, 4
          %s221 = smul.addr %s29, 12
          %s222 = sadd.s32 %s220, %s221
          %s223 = smul.addr %s222, 128
          %s224 = scalar_lea.hbm %s1, %s223
          %s225 = sshll.u32 %s216, 4
          %s226 = int_to_ptr.vmem [resolvable:$true] %s225
          %231 = dma.hbm_to_vmem [thread:$0]  %s224, 512, %s226, %s213, 128, 128, 8
        $region32: #{tpu_custom_call.1} parent=27 // pred_fallthru
          _
        // Predicated region
        $region33: #{tpu_custom_call.1} parent=27 // pred_check
          %p232 = pneg %p84
        $region34: #{tpu_custom_call.1} parent=27 // pred_check_branch
          %234 = sbr.rel (%p232) target = $region36
        $region35: #{tpu_custom_call.1} parent=27 // pred_region
          %s235 = sand.u32 %s74, 1
          %s236 = scalar_lea.sflag [#allocation9], %s235
          %s237 = sand.u32 %s74, 1
          %s238 = smul.addr %s237, 32
          %s239 = scalar_lea.vmem [#allocation8], %s238
          %s241 = ssub.s32 512, 512
          %242 = vsyncadd %s236, %s241
          %s243 = smul.addr %s30, 4
          %s244 = smul.addr %s29, 12
          %s245 = sadd.s32 %s243, %s244
          %s246 = smul.addr %s245, 128
          %s247 = scalar_lea.hbm %s2, %s246
          %s248 = sshll.u32 %s239, 4
          %s249 = int_to_ptr.vmem [resolvable:$true] %s248
          %254 = dma.hbm_to_vmem [thread:$0]  %s247, 512, %s249, %s236, 128, 128, 8
        $region36: #{tpu_custom_call.1} parent=27 // pred_fallthru
          _
      $region28: #{tpu_custom_call.1} parent=5 // pred_fallthru
        _
      %p255 = scmp.le.s32.totalorder 1, %s22
      %p256 = scmp.lt.s32.totalorder %s22, 7
      %p257 = pnand %p255, %p256
      %p258 = pneg %p257
      // Predicated region
      $region37: #{tpu_custom_call.1} parent=5 // pred_check
        _
      $region38: #{tpu_custom_call.1} parent=5 // pred_check_branch
        %260 = sbr.rel (%p257) target = $region40
      $region39: #{tpu_custom_call.1} parent=5 // pred_region
        %s261 = ssub.s32 %s22, 1
        %s262 = sand.u32 %s49, 1
        %s263 = scalar_lea.sflag [#allocation6], %s262
        %s264 = sand.u32 %s49, 1
        %s265 = smul.addr %s264, 32
        %s266 = scalar_lea.vmem [#allocation5], %s265
        // Predicated region
        $region41: #{tpu_custom_call.1} parent=39 // pred_check
          %p267 = pneg %p62
        $region42: #{tpu_custom_call.1} parent=39 // pred_check_branch
          %269 = sbr.rel (%p267) target = $region44
        $region43: #{tpu_custom_call.1} parent=39 // pred_region
          %270 = dma.done %s263, 512
        $region44: #{tpu_custom_call.1} parent=39 // pred_fallthru
          _
        %s271 = sand.u32 %s77, 1
        %s272 = scalar_lea.sflag [#allocation9], %s271
        %s273 = sand.u32 %s77, 1
        %s274 = smul.addr %s273, 32
        %s275 = scalar_lea.vmem [#allocation8], %s274
        // Predicated region
        $region45: #{tpu_custom_call.1} parent=39 // pred_check
          %p276 = pneg %p90
        $region46: #{tpu_custom_call.1} parent=39 // pred_check_branch
          %278 = sbr.rel (%p276) target = $region48
        $region47: #{tpu_custom_call.1} parent=39 // pred_region
          %279 = dma.done %s272, 512
        $region48: #{tpu_custom_call.1} parent=39 // pred_fallthru
          _
        %s280 = sand.u32 %s49, 1
        %s281 = scalar_lea.sflag [#allocation6], %s280
        %s282 = sand.u32 %s49, 1
        %s283 = smul.addr %s282, 32
        %s284 = scalar_lea.vmem [#allocation5], %s283
        %p285 = pneg %p62
        %p286 = pneg %p59
        %s287 = sand.u32 %s77, 1
        %s288 = scalar_lea.sflag [#allocation9], %s287
        %s289 = sand.u32 %s77, 1
        %s290 = smul.addr %s289, 32
        %s291 = scalar_lea.vmem [#allocation8], %s290
        %p292 = pneg %p90
        %p293 = pneg %p87
        %p294 = pneg %p111
        %p295 = pneg %p108
        %p296 = pneg %p132
        %p297 = pneg %p129
        %p298 = pneg %p153
        %p299 = pneg %p150
        %p300 = pneg %p181
        %p301 = pneg %p178
        %s302 = sand.u32 %s168, 1
        %s303 = scalar_lea.sflag [#allocation7], %s302
        %s304 = sand.u32 %s168, 1
        %s305 = smul.addr %s304, 8
        %s306 = scalar_lea.vmem [#allocation10], %s305
        %v307 = vld [vmem:[%s3] sm:$0xff]
        %v308 = vld [vmem:[%s3 + $0x8] sm:$0xff]
        %v309 = vld [vmem:[%s3 + $0x10] sm:$0xff]
        %v310 = vld [vmem:[%s3 + $0x18] sm:$0xff]
        %v311 = vld [vmem:[%s4] sm:$0xff]
        %v312 = vld [vmem:[%s4 + $0x8] sm:$0xff]
        %v313 = vld [vmem:[%s5] sm:$0xff]
        %v314 = vld [vmem:[%s5 + $0x8] sm:$0xff]
        %v315 = vld [vmem:[%s266] ss:$2 sm:$0xff]
        %s316 = scalar_lea.vmem %s266, 16 [#allocation5]
        %v317 = vld [vmem:[%s316] ss:$2 sm:$0xff]
        %s318 = scalar_lea.vmem %s266, 1 [#allocation5]
        %v319 = vld [vmem:[%s318] ss:$2 sm:$0xff]
        %s320 = scalar_lea.vmem %s266, 17 [#allocation5]
        %v321 = vld [vmem:[%s320] ss:$2 sm:$0xff]
        %v322 = vadd.f32 %v315, %v319
        %v323 = vadd.f32 %v317, %v321
        %v324 = vmul.f32 %v322, 0.5
        %v325 = vmul.f32 %v323, 0.5
        %vm326 = vcmask 261120
        %v328 = vsel %vm326, %v324, 0
        %v331 = vsel %vm326, %v325, 0
        %333 = vmatprep.subr.mxu0 0.0
        %334 = vmatpush1.msra.mxu0 %v307
        %335 = vmatprep.subr.mxu0 0.0
        %336 = vmatpush1.msra.mxu0 %v308
        %337 = vmatprep.subr.mxu0 0.0
        %338 = vmatpush1.msra.mxu0 %v309
        %339 = vmatprep.subr.mxu0 0.0
        %340 = vmatpush1.msra.mxu0 %v310
        %341 = vmatprep.subr.mxu0 0.0
        %342 = vmatpush1.msra.mxu0 0.0
        %343 = vmatprep.subr.mxu0 0.0
        %344 = vmatpush1.msra.mxu0 0.0
        %345 = vmatprep.subr.mxu0 0.0
        %346 = vmatpush1.msra.mxu0 0.0
        %347 = vmatprep.subr.mxu0 0.0
        %348 = vmatpush1.msra.mxu0 0.0
        %349 = vmatprep.subr.mxu0 0.0
        %350 = vmatpush1.msra.mxu0 0.0
        %351 = vmatprep.subr.mxu0 0.0
        %352 = vmatpush1.msra.mxu0 0.0
        %353 = vmatprep.subr.mxu0 0.0
        %354 = vmatpush1.msra.mxu0 0.0
        %355 = vmatprep.subr.mxu0 0.0
        %356 = vmatpush1.msra.mxu0 0.0
        %357 = vmatprep.subr.mxu0 0.0
        %358 = vmatpush1.msra.mxu0 0.0
        %359 = vmatprep.subr.mxu0 0.0
        %360 = vmatpush1.msra.mxu0 0.0
        %361 = vmatprep.subr.mxu0 0.0
        %362 = vmatpush1.msra.mxu0 0.0
        %363 = vmatprep.subr.mxu0 0.0
        %364 = vmatpush1.msra.mxu0 0.0
        %365 = vmatprep.subr.mxu0 0.0
        %366 = vmatpush1.msra.mxu0 0.0
        %367 = vmatprep.subr.mxu0 0.0
        %368 = vmatpush1.msra.mxu0 0.0
        %369 = vmatprep.subr.mxu0 0.0
        %370 = vmatpush1.msra.mxu0 0.0
        %371 = vmatprep.subr.mxu0 0.0
        %372 = vmatpush1.msra.mxu0 0.0
        %373 = vmatprep.subr.mxu0 0.0
        %374 = vmatpush1.msra.mxu0 0.0
        %375 = vmatprep.subr.mxu0 0.0
        %376 = vmatpush1.msra.mxu0 0.0
        %377 = vmatprep.subr.mxu0 0.0
        %378 = vmatpush1.msra.mxu0 0.0
        %379 = vmatprep.subr.mxu0 0.0
        %380 = vmatpush1.msra.mxu0 0.0
        %381 = vmatprep.subr.mxu0 0.0
        %382 = vmatpush1.msra.mxu0 0.0
        %383 = vmatprep.subr.mxu0 0.0
        %384 = vmatpush1.msra.mxu0 0.0
        %385 = vmatprep.subr.mxu0 0.0
        %386 = vmatpush1.msra.mxu0 0.0
        %387 = vmatprep.subr.mxu0 0.0
        %388 = vmatpush1.msra.mxu0 0.0
        %389 = vmatprep.subr.mxu0 0.0
        %390 = vmatpush1.msra.mxu0 0.0
        %391 = vmatprep.subr.mxu0 0.0
        %392 = vmatpush1.msra.mxu0 0.0
        %393 = vmatprep.subr.mxu0 0.0
        %394 = vmatpush1.msra.mxu0 0.0
        %395 = vmatprep.subr.mxu0 0.0
        %396 = vmatpush1.msra.mxu0 0.0
        %397 = vmatprep.mubr.f32.mxu0 0.0
        %398 = vmatmul.mubr.f32.gmra.mrb[0].mxu0 %v328
        %v399 = vpop.f32.mrb[0].mxu0
        %v400 = vadd.f32 0.0, %v399
        %v401 = vpop.f32.mrb[0].mxu0
        %402 = vmatprep.mubr.f32.mxu0 0.0
        %403 = vmatmul.mubr.f32.gmra.mrb[0].mxu0 %v331
        %v404 = vpop.f32.mrb[0].mxu0
        %v405 = vadd.f32 0.0, %v404
        %v406 = vpop.f32.mrb[0].mxu0
        %407 = vdwg.mxu0
        %v408 = vld [vmem:[%s275] ss:$2 sm:$0xff]
        %s409 = scalar_lea.vmem %s275, 16 [#allocation8]
        %v410 = vld [vmem:[%s409] ss:$2 sm:$0xff]
        %s411 = scalar_lea.vmem %s275, 1 [#allocation8]
        %v412 = vld [vmem:[%s411] ss:$2 sm:$0xff]
        %s413 = scalar_lea.vmem %s275, 17 [#allocation8]
        %v414 = vld [vmem:[%s413] ss:$2 sm:$0xff]
        %v415 = vadd.f32 %v408, %v412
        %v416 = vadd.f32 %v410, %v414
        %v417 = vmul.f32 %v415, 0.5
        %v418 = vmul.f32 %v416, 0.5
        %v420 = vsel %vm326, %v417, 0
        %v423 = vsel %vm326, %v418, 0
        %425 = vmatprep.subr.mxu0 0.0
        %426 = vmatpush1.msra.mxu0 %v307
        %427 = vmatprep.subr.mxu0 0.0
        %428 = vmatpush1.msra.mxu0 %v308
        %429 = vmatprep.subr.mxu0 0.0
        %430 = vmatpush1.msra.mxu0 %v309
        %431 = vmatprep.subr.mxu0 0.0
        %432 = vmatpush1.msra.mxu0 %v310
        %433 = vmatprep.subr.mxu0 0.0
        %434 = vmatpush1.msra.mxu0 0.0
        %435 = vmatprep.subr.mxu0 0.0
        %436 = vmatpush1.msra.mxu0 0.0
        %437 = vmatprep.subr.mxu0 0.0
        %438 = vmatpush1.msra.mxu0 0.0
        %439 = vmatprep.subr.mxu0 0.0
        %440 = vmatpush1.msra.mxu0 0.0
        %441 = vmatprep.subr.mxu0 0.0
        %442 = vmatpush1.msra.mxu0 0.0
        %443 = vmatprep.subr.mxu0 0.0
        %444 = vmatpush1.msra.mxu0 0.0
        %445 = vmatprep.subr.mxu0 0.0
        %446 = vmatpush1.msra.mxu0 0.0
        %447 = vmatprep.subr.mxu0 0.0
        %448 = vmatpush1.msra.mxu0 0.0
        %449 = vmatprep.subr.mxu0 0.0
        %450 = vmatpush1.msra.mxu0 0.0
        %451 = vmatprep.subr.mxu0 0.0
        %452 = vmatpush1.msra.mxu0 0.0
        %453 = vmatprep.subr.mxu0 0.0
        %454 = vmatpush1.msra.mxu0 0.0
        %455 = vmatprep.subr.mxu0 0.0
        %456 = vmatpush1.msra.mxu0 0.0
        %457 = vmatprep.subr.mxu0 0.0
        %458 = vmatpush1.msra.mxu0 0.0
        %459 = vmatprep.subr.mxu0 0.0
        %460 = vmatpush1.msra.mxu0 0.0
        %461 = vmatprep.subr.mxu0 0.0
        %462 = vmatpush1.msra.mxu0 0.0
        %463 = vmatprep.subr.mxu0 0.0
        %464 = vmatpush1.msra.mxu0 0.0
        %465 = vmatprep.subr.mxu0 0.0
        %466 = vmatpush1.msra.mxu0 0.0
        %467 = vmatprep.subr.mxu0 0.0
        %468 = vmatpush1.msra.mxu0 0.0
        %469 = vmatprep.subr.mxu0 0.0
        %470 = vmatpush1.msra.mxu0 0.0
        %471 = vmatprep.subr.mxu0 0.0
        %472 = vmatpush1.msra.mxu0 0.0
        %473 = vmatprep.subr.mxu0 0.0
        %474 = vmatpush1.msra.mxu0 0.0
        %475 = vmatprep.subr.mxu0 0.0
        %476 = vmatpush1.msra.mxu0 0.0
        %477 = vmatprep.subr.mxu0 0.0
        %478 = vmatpush1.msra.mxu0 0.0
        %479 = vmatprep.subr.mxu0 0.0
        %480 = vmatpush1.msra.mxu0 0.0
        %481 = vmatprep.subr.mxu0 0.0
        %482 = vmatpush1.msra.mxu0 0.0
        %483 = vmatprep.subr.mxu0 0.0
        %484 = vmatpush1.msra.mxu0 0.0
        %485 = vmatprep.subr.mxu0 0.0
        %486 = vmatpush1.msra.mxu0 0.0
        %487 = vmatprep.subr.mxu0 0.0
        %488 = vmatpush1.msra.mxu0 0.0
        %489 = vmatprep.mubr.f32.mxu0 0.0
        %490 = vmatmul.mubr.f32.gmra.mrb[0].mxu0 %v420
        %v491 = vpop.f32.mrb[0].mxu0
        %v492 = vadd.f32 0.0, %v491
        %v493 = vpop.f32.mrb[0].mxu0
        %494 = vmatprep.mubr.f32.mxu0 0.0
        %495 = vmatmul.mubr.f32.gmra.mrb[0].mxu0 %v423
        %v496 = vpop.f32.mrb[0].mxu0
        %v497 = vadd.f32 0.0, %v496
        %v498 = vpop.f32.mrb[0].mxu0
        %499 = vdwg.mxu0
        %v500 = vmul.f32 %v400, %v400
        %v501 = vmul.f32 %v405, %v405
        %s502 = scalar_lea.vmem [#allocation2], 32
        %vm503 = vcmask 130048
        %504 = vst.msk [vmem:[%s502] sm:$0xff] %vm503, %v500
        %505 = vst.msk [vmem:[%s502 + $0x8] sm:$0xff] %vm503, %v501
        %v506 = vmul.f32 %v492, %v492
        %v507 = vmul.f32 %v497, %v497
        %s508 = scalar_lea.vmem [#allocation2], 48
        %509 = vst.msk [vmem:[%s508] sm:$0xff] %vm503, %v506
        %510 = vst.msk [vmem:[%s508 + $0x8] sm:$0xff] %vm503, %v507
        %v511 = vmul.f32 %v400, %v492
        %v512 = vmul.f32 %v405, %v497
        %s513 = scalar_lea.vmem [#allocation2], 64
        %514 = vst.msk [vmem:[%s513] sm:$0xff] %vm503, %v511
        %515 = vst.msk [vmem:[%s513 + $0x8] sm:$0xff] %vm503, %v512
        %516 = vst.msk [vmem:[#allocation2] sm:$0xff] %vm503, %v400
        %517 = vst.msk [vmem:[#allocation2 + $0x8] sm:$0xff] %vm503, %v405
        %s518 = scalar_lea.vmem [#allocation2], 16
        %519 = vst.msk [vmem:[%s518] sm:$0xff] %vm503, %v492
        %520 = vst.msk [vmem:[%s518 + $0x8] sm:$0xff] %vm503, %v497
        %v521 = vld [vmem:[#allocation2] sm:$0xff]
        %v522 = vld [vmem:[#allocation2 + $0x8] sm:$0xff]
        %v523 = vld [vmem:[#allocation2 + $0x10] sm:$0xff]
        %v524 = vld [vmem:[#allocation2 + $0x18] sm:$0xff]
        %v525 = vld [vmem:[#allocation2 + $0x20] sm:$0xff]
        %v526 = vld [vmem:[#allocation2 + $0x28] sm:$0xff]
        %v527 = vld [vmem:[#allocation2 + $0x30] sm:$0xff]
        %v528 = vld [vmem:[#allocation2 + $0x38] sm:$0xff]
        %v529 = vld [vmem:[#allocation2 + $0x40] sm:$0xff]
        %v530 = vld [vmem:[#allocation2 + $0x48] sm:$0xff]
        %v532 = vsel %vm503, %v521, 0
        %v535 = vsel %vm503, %v522, 0
        %v538 = vsel %vm503, %v523, 0
        %v541 = vsel %vm503, %v524, 0
        %v544 = vsel %vm503, %v525, 0
        %v547 = vsel %vm503, %v526, 0
        %v550 = vsel %vm503, %v527, 0
        %v553 = vsel %vm503, %v528, 0
        %v556 = vsel %vm503, %v529, 0
        %v559 = vsel %vm503, %v530, 0
        %561 = vmatprep.subr.mxu0 0.0
        %562 = vmatpush1.msra.mxu0 %v311
        %563 = vmatprep.subr.mxu0 0.0
        %564 = vmatpush1.msra.mxu0 %v312
        %565 = vmatprep.subr.mxu0 0.0
        %566 = vmatpush1.msra.mxu0 0.0
        %567 = vmatprep.subr.mxu0 0.0
        %568 = vmatpush1.msra.mxu0 0.0
        %569 = vmatprep.subr.mxu0 0.0
        %570 = vmatpush1.msra.mxu0 0.0
        %571 = vmatprep.subr.mxu0 0.0
        %572 = vmatpush1.msra.mxu0 0.0
        %573 = vmatprep.subr.mxu0 0.0
        %574 = vmatpush1.msra.mxu0 0.0
        %575 = vmatprep.subr.mxu0 0.0
        %576 = vmatpush1.msra.mxu0 0.0
        %577 = vmatprep.subr.mxu0 0.0
        %578 = vmatpush1.msra.mxu0 0.0
        %579 = vmatprep.subr.mxu0 0.0
        %580 = vmatpush1.msra.mxu0 0.0
        %581 = vmatprep.subr.mxu0 0.0
        %582 = vmatpush1.msra.mxu0 0.0
        %583 = vmatprep.subr.mxu0 0.0
        %584 = vmatpush1.msra.mxu0 0.0
        %585 = vmatprep.subr.mxu0 0.0
        %586 = vmatpush1.msra.mxu0 0.0
        %587 = vmatprep.subr.mxu0 0.0
        %588 = vmatpush1.msra.mxu0 0.0
        %589 = vmatprep.subr.mxu0 0.0
        %590 = vmatpush1.msra.mxu0 0.0
        %591 = vmatprep.subr.mxu0 0.0
        %592 = vmatpush1.msra.mxu0 0.0
        %593 = vmatprep.subr.mxu0 0.0
        %594 = vmatpush1.msra.mxu0 0.0
        %595 = vmatprep.subr.mxu0 0.0
        %596 = vmatpush1.msra.mxu0 0.0
        %597 = vmatprep.subr.mxu0 0.0
        %598 = vmatpush1.msra.mxu0 0.0
        %599 = vmatprep.subr.mxu0 0.0
        %600 = vmatpush1.msra.mxu0 0.0
        %601 = vmatprep.subr.mxu0 0.0
        %602 = vmatpush1.msra.mxu0 0.0
        %603 = vmatprep.subr.mxu0 0.0
        %604 = vmatpush1.msra.mxu0 0.0
        %605 = vmatprep.subr.mxu0 0.0
        %606 = vmatpush1.msra.mxu0 0.0
        %607 = vmatprep.subr.mxu0 0.0
        %608 = vmatpush1.msra.mxu0 0.0
        %609 = vmatprep.subr.mxu0 0.0
        %610 = vmatpush1.msra.mxu0 0.0
        %611 = vmatprep.subr.mxu0 0.0
        %612 = vmatpush1.msra.mxu0 0.0
        %613 = vmatprep.subr.mxu0 0.0
        %614 = vmatpush1.msra.mxu0 0.0
        %615 = vmatprep.subr.mxu0 0.0
        %616 = vmatpush1.msra.mxu0 0.0
        %617 = vmatprep.subr.mxu0 0.0
        %618 = vmatpush1.msra.mxu0 0.0
        %619 = vmatprep.subr.mxu0 0.0
        %620 = vmatpush1.msra.mxu0 0.0
        %621 = vmatprep.subr.mxu0 0.0
        %622 = vmatpush1.msra.mxu0 0.0
        %623 = vmatprep.subr.mxu0 0.0
        %624 = vmatpush1.msra.mxu0 0.0
        %625 = vmatprep.mubr.f32.mxu0 0.0
        %626 = vmatmul.mubr.f32.gmra.mrb[0].mxu0 %v532
        %v627 = vpop.f32.mrb[0].mxu0
        %v628 = vadd.f32 0.0, %v627
        %v629 = vpop.f32.mrb[0].mxu0
        %630 = vmatprep.mubr.f32.mxu0 0.0
        %631 = vmatmul.mubr.f32.gmra.mrb[0].mxu0 %v535
        %v632 = vpop.f32.mrb[0].mxu0
        %v633 = vadd.f32 0.0, %v632
        %v634 = vpop.f32.mrb[0].mxu0
        %635 = vmatprep.mubr.f32.mxu0 0.0
        %636 = vmatmul.mubr.f32.gmra.mrb[0].mxu0 %v538
        %v637 = vpop.f32.mrb[0].mxu0
        %v638 = vadd.f32 0.0, %v637
        %v639 = vpop.f32.mrb[0].mxu0
        %640 = vmatprep.mubr.f32.mxu0 0.0
        %641 = vmatmul.mubr.f32.gmra.mrb[0].mxu0 %v541
        %v642 = vpop.f32.mrb[0].mxu0
        %v643 = vadd.f32 0.0, %v642
        %v644 = vpop.f32.mrb[0].mxu0
        %645 = vmatprep.mubr.f32.mxu0 0.0
        %646 = vmatmul.mubr.f32.gmra.mrb[0].mxu0 %v544
        %v647 = vpop.f32.mrb[0].mxu0
        %v648 = vadd.f32 0.0, %v647
        %v649 = vpop.f32.mrb[0].mxu0
        %650 = vmatprep.mubr.f32.mxu0 0.0
        %651 = vmatmul.mubr.f32.gmra.mrb[0].mxu0 %v547
        %v652 = vpop.f32.mrb[0].mxu0
        %v653 = vadd.f32 0.0, %v652
        %v654 = vpop.f32.mrb[0].mxu0
        %655 = vmatprep.mubr.f32.mxu0 0.0
        %656 = vmatmul.mubr.f32.gmra.mrb[0].mxu0 %v550
        %v657 = vpop.f32.mrb[0].mxu0
        %v658 = vadd.f32 0.0, %v657
        %v659 = vpop.f32.mrb[0].mxu0
        %660 = vmatprep.mubr.f32.mxu0 0.0
        %661 = vmatmul.mubr.f32.gmra.mrb[0].mxu0 %v553
        %v662 = vpop.f32.mrb[0].mxu0
        %v663 = vadd.f32 0.0, %v662
        %v664 = vpop.f32.mrb[0].mxu0
        %665 = vmatprep.mubr.f32.mxu0 0.0
        %666 = vmatmul.mubr.f32.gmra.mrb[0].mxu0 %v556
        %v667 = vpop.f32.mrb[0].mxu0
        %v668 = vadd.f32 0.0, %v667
        %v669 = vpop.f32.mrb[0].mxu0
        %670 = vmatprep.mubr.f32.mxu0 0.0
        %671 = vmatmul.mubr.f32.gmra.mrb[0].mxu0 %v559
        %v672 = vpop.f32.mrb[0].mxu0
        %v673 = vadd.f32 0.0, %v672
        %v674 = vpop.f32.mrb[0].mxu0
        %675 = vdwg.mxu0
        %676 = vxpose.xlu0.b32.start [1/16] %v628, 128
        %677 = vxpose.xlu0.b32.cont [2/16] %v633, 128
        %678 = vxpose.xlu0.b32.cont [3/16] 0.0, 128
        %679 = vxpose.xlu0.b32.cont [4/16] 0.0, 128
        %680 = vxpose.xlu0.b32.cont [5/16] 0.0, 128
        %681 = vxpose.xlu0.b32.cont [6/16] 0.0, 128
        %682 = vxpose.xlu0.b32.cont [7/16] 0.0, 128
        %683 = vxpose.xlu0.b32.cont [8/16] 0.0, 128
        %684 = vxpose.xlu0.b32.cont [9/16] 0.0, 128
        %685 = vxpose.xlu0.b32.cont [10/16] 0.0, 128
        %686 = vxpose.xlu0.b32.cont [11/16] 0.0, 128
        %687 = vxpose.xlu0.b32.cont [12/16] 0.0, 128
        %688 = vxpose.xlu0.b32.cont [13/16] 0.0, 128
        %689 = vxpose.xlu0.b32.cont [14/16] 0.0, 128
        %690 = vxpose.xlu0.b32.cont [15/16] 0.0, 128
        %691 = vxpose.xlu0.b32.end [16/16] 0.0, 128
        %v692 = vpop.trf.xlu0
        %v693 = vpop.trf.xlu0
        %v694 = vpop.trf.xlu0
        %v695 = vpop.trf.xlu0
        %v696 = vpop.trf.xlu0
        %v697 = vpop.trf.xlu0
        %v698 = vpop.trf.xlu0
        %v699 = vpop.trf.xlu0
        %v700 = vpop.trf.xlu0
        %v701 = vpop.trf.xlu0
        %v702 = vpop.trf.xlu0
        %v703 = vpop.trf.xlu0
        %v704 = vpop.trf.xlu0
        %v705 = vpop.trf.xlu0
        %v706 = vpop.trf.xlu0
        %v707 = vpop.trf.xlu0
        %708 = vxpose.xlu0.b32.start [1/16] %v638, 128
        %709 = vxpose.xlu0.b32.cont [2/16] %v643, 128
        %710 = vxpose.xlu0.b32.cont [3/16] 0.0, 128
        %711 = vxpose.xlu0.b32.cont [4/16] 0.0, 128
        %712 = vxpose.xlu0.b32.cont [5/16] 0.0, 128
        %713 = vxpose.xlu0.b32.cont [6/16] 0.0, 128
        %714 = vxpose.xlu0.b32.cont [7/16] 0.0, 128
        %715 = vxpose.xlu0.b32.cont [8/16] 0.0, 128
        %716 = vxpose.xlu0.b32.cont [9/16] 0.0, 128
        %717 = vxpose.xlu0.b32.cont [10/16] 0.0, 128
        %718 = vxpose.xlu0.b32.cont [11/16] 0.0, 128
        %719 = vxpose.xlu0.b32.cont [12/16] 0.0, 128
        %720 = vxpose.xlu0.b32.cont [13/16] 0.0, 128
        %721 = vxpose.xlu0.b32.cont [14/16] 0.0, 128
        %722 = vxpose.xlu0.b32.cont [15/16] 0.0, 128
        %723 = vxpose.xlu0.b32.end [16/16] 0.0, 128
        %v724 = vpop.trf.xlu0
        %v725 = vpop.trf.xlu0
        %v726 = vpop.trf.xlu0
        %v727 = vpop.trf.xlu0
        %v728 = vpop.trf.xlu0
        %v729 = vpop.trf.xlu0
        %v730 = vpop.trf.xlu0
        %v731 = vpop.trf.xlu0
        %v732 = vpop.trf.xlu0
        %v733 = vpop.trf.xlu0
        %v734 = vpop.trf.xlu0
        %v735 = vpop.trf.xlu0
        %v736 = vpop.trf.xlu0
        %v737 = vpop.trf.xlu0
        %v738 = vpop.trf.xlu0
        %v739 = vpop.trf.xlu0
        %740 = vxpose.xlu0.b32.start [1/16] %v648, 128
        %741 = vxpose.xlu0.b32.cont [2/16] %v653, 128
        %742 = vxpose.xlu0.b32.cont [3/16] 0.0, 128
        %743 = vxpose.xlu0.b32.cont [4/16] 0.0, 128
        %744 = vxpose.xlu0.b32.cont [5/16] 0.0, 128
        %745 = vxpose.xlu0.b32.cont [6/16] 0.0, 128
        %746 = vxpose.xlu0.b32.cont [7/16] 0.0, 128
        %747 = vxpose.xlu0.b32.cont [8/16] 0.0, 128
        %748 = vxpose.xlu0.b32.cont [9/16] 0.0, 128
        %749 = vxpose.xlu0.b32.cont [10/16] 0.0, 128
        %750 = vxpose.xlu0.b32.cont [11/16] 0.0, 128
        %751 = vxpose.xlu0.b32.cont [12/16] 0.0, 128
        %752 = vxpose.xlu0.b32.cont [13/16] 0.0, 128
        %753 = vxpose.xlu0.b32.cont [14/16] 0.0, 128
        %754 = vxpose.xlu0.b32.cont [15/16] 0.0, 128
        %755 = vxpose.xlu0.b32.end [16/16] 0.0, 128
        %v756 = vpop.trf.xlu0
        %v757 = vpop.trf.xlu0
        %v758 = vpop.trf.xlu0
        %v759 = vpop.trf.xlu0
        %v760 = vpop.trf.xlu0
        %v761 = vpop.trf.xlu0
        %v762 = vpop.trf.xlu0
        %v763 = vpop.trf.xlu0
        %v764 = vpop.trf.xlu0
        %v765 = vpop.trf.xlu0
        %v766 = vpop.trf.xlu0
        %v767 = vpop.trf.xlu0
        %v768 = vpop.trf.xlu0
        %v769 = vpop.trf.xlu0
        %v770 = vpop.trf.xlu0
        %v771 = vpop.trf.xlu0
        %772 = vxpose.xlu0.b32.start [1/16] %v658, 128
        %773 = vxpose.xlu0.b32.cont [2/16] %v663, 128
        %774 = vxpose.xlu0.b32.cont [3/16] 0.0, 128
        %775 = vxpose.xlu0.b32.cont [4/16] 0.0, 128
        %776 = vxpose.xlu0.b32.cont [5/16] 0.0, 128
        %777 = vxpose.xlu0.b32.cont [6/16] 0.0, 128
        %778 = vxpose.xlu0.b32.cont [7/16] 0.0, 128
        %779 = vxpose.xlu0.b32.cont [8/16] 0.0, 128
        %780 = vxpose.xlu0.b32.cont [9/16] 0.0, 128
        %781 = vxpose.xlu0.b32.cont [10/16] 0.0, 128
        %782 = vxpose.xlu0.b32.cont [11/16] 0.0, 128
        %783 = vxpose.xlu0.b32.cont [12/16] 0.0, 128
        %784 = vxpose.xlu0.b32.cont [13/16] 0.0, 128
        %785 = vxpose.xlu0.b32.cont [14/16] 0.0, 128
        %786 = vxpose.xlu0.b32.cont [15/16] 0.0, 128
        %787 = vxpose.xlu0.b32.end [16/16] 0.0, 128
        %v788 = vpop.trf.xlu0
        %v789 = vpop.trf.xlu0
        %v790 = vpop.trf.xlu0
        %v791 = vpop.trf.xlu0
        %v792 = vpop.trf.xlu0
        %v793 = vpop.trf.xlu0
        %v794 = vpop.trf.xlu0
        %v795 = vpop.trf.xlu0
        %v796 = vpop.trf.xlu0
        %v797 = vpop.trf.xlu0
        %v798 = vpop.trf.xlu0
        %v799 = vpop.trf.xlu0
        %v800 = vpop.trf.xlu0
        %v801 = vpop.trf.xlu0
        %v802 = vpop.trf.xlu0
        %v803 = vpop.trf.xlu0
        %804 = vxpose.xlu0.b32.start [1/16] %v668, 128
        %805 = vxpose.xlu0.b32.cont [2/16] %v673, 128
        %806 = vxpose.xlu0.b32.cont [3/16] 0.0, 128
        %807 = vxpose.xlu0.b32.cont [4/16] 0.0, 128
        %808 = vxpose.xlu0.b32.cont [5/16] 0.0, 128
        %809 = vxpose.xlu0.b32.cont [6/16] 0.0, 128
        %810 = vxpose.xlu0.b32.cont [7/16] 0.0, 128
        %811 = vxpose.xlu0.b32.cont [8/16] 0.0, 128
        %812 = vxpose.xlu0.b32.cont [9/16] 0.0, 128
        %813 = vxpose.xlu0.b32.cont [10/16] 0.0, 128
        %814 = vxpose.xlu0.b32.cont [11/16] 0.0, 128
        %815 = vxpose.xlu0.b32.cont [12/16] 0.0, 128
        %816 = vxpose.xlu0.b32.cont [13/16] 0.0, 128
        %817 = vxpose.xlu0.b32.cont [14/16] 0.0, 128
        %818 = vxpose.xlu0.b32.cont [15/16] 0.0, 128
        %819 = vxpose.xlu0.b32.end [16/16] 0.0, 128
        %v820 = vpop.trf.xlu0
        %v821 = vpop.trf.xlu0
        %v822 = vpop.trf.xlu0
        %v823 = vpop.trf.xlu0
        %v824 = vpop.trf.xlu0
        %v825 = vpop.trf.xlu0
        %v826 = vpop.trf.xlu0
        %v827 = vpop.trf.xlu0
        %v828 = vpop.trf.xlu0
        %v829 = vpop.trf.xlu0
        %v830 = vpop.trf.xlu0
        %v831 = vpop.trf.xlu0
        %v832 = vpop.trf.xlu0
        %v833 = vpop.trf.xlu0
        %v834 = vpop.trf.xlu0
        %v835 = vpop.trf.xlu0
        %v841 = vcombine.high %v692, %v692
        %v843 = vunpack.c.l.s4 1983009808
        %v844 = vunpack.c.0.s8 %v843
        %v845 = vlaneseq
        %v846 = vshrl.u32 %v845, 7
        %v847 = vsub.s32 %v844, %v846
        %v848 = vrot.slane %v692, %v847
        %v850 = vunpack.c.l.s4 1983009808
        %v851 = vunpack.c.0.s8 %v850
        %v852 = vlaneseq
        %v853 = vshrl.u32 %v852, 7
        %v854 = vsub.s32 %v851, %v853
        %v855 = vrot.slane %v841, %v854
        %v856 = vcombine.high %v848, %v848
        %v857 = vcombine.high %v724, %v724
        %v859 = vunpack.c.l.s4 1983009808
        %v860 = vunpack.c.0.s8 %v859
        %v861 = vlaneseq
        %v862 = vshrl.u32 %v861, 7
        %v863 = vsub.s32 %v860, %v862
        %v864 = vrot.slane %v724, %v863
        %v866 = vunpack.c.l.s4 1983009808
        %v867 = vunpack.c.0.s8 %v866
        %v868 = vlaneseq
        %v869 = vshrl.u32 %v868, 7
        %v870 = vsub.s32 %v867, %v869
        %v871 = vrot.slane %v857, %v870
        %v872 = vcombine.high %v864, %v864
        %v873 = vcombine.high %v756, %v756
        %v875 = vunpack.c.l.s4 1983009808
        %v876 = vunpack.c.0.s8 %v875
        %v877 = vlaneseq
        %v878 = vshrl.u32 %v877, 7
        %v879 = vsub.s32 %v876, %v878
        %v880 = vrot.slane %v756, %v879
        %v882 = vunpack.c.l.s4 1983009808
        %v883 = vunpack.c.0.s8 %v882
        %v884 = vlaneseq
        %v885 = vshrl.u32 %v884, 7
        %v886 = vsub.s32 %v883, %v885
        %v887 = vrot.slane %v873, %v886
        %v888 = vcombine.high %v880, %v880
        %v889 = vcombine.high %v788, %v788
        %v891 = vunpack.c.l.s4 1983009808
        %v892 = vunpack.c.0.s8 %v891
        %v893 = vlaneseq
        %v894 = vshrl.u32 %v893, 7
        %v895 = vsub.s32 %v892, %v894
        %v896 = vrot.slane %v788, %v895
        %v898 = vunpack.c.l.s4 1983009808
        %v899 = vunpack.c.0.s8 %v898
        %v900 = vlaneseq
        %v901 = vshrl.u32 %v900, 7
        %v902 = vsub.s32 %v899, %v901
        %v903 = vrot.slane %v889, %v902
        %v904 = vcombine.high %v896, %v896
        %v905 = vcombine.high %v820, %v820
        %v907 = vunpack.c.l.s4 1983009808
        %v908 = vunpack.c.0.s8 %v907
        %v909 = vlaneseq
        %v910 = vshrl.u32 %v909, 7
        %v911 = vsub.s32 %v908, %v910
        %v912 = vrot.slane %v820, %v911
        %v914 = vunpack.c.l.s4 1983009808
        %v915 = vunpack.c.0.s8 %v914
        %v916 = vlaneseq
        %v917 = vshrl.u32 %v916, 7
        %v918 = vsub.s32 %v915, %v917
        %v919 = vrot.slane %v905, %v918
        %v920 = vcombine.high %v912, %v912
        %v921 = vcombine.low %v848, %v856
        %v922 = vcombine.low %v855, %v864
        %v924 = vunpack.c.l.s4 1983009808
        %v925 = vunpack.c.0.s8 %v924
        %v926 = vlaneseq
        %v927 = vshrl.u32 %v926, 7
        %v928 = vsub.s32 %v925, %v927
        %v929 = vrot.slane %v921, %v928
        %v931 = vunpack.c.l.s4 1983009808
        %v932 = vunpack.c.0.s8 %v931
        %v933 = vlaneseq
        %v934 = vshrl.u32 %v933, 7
        %v935 = vsub.s32 %v932, %v934
        %v936 = vrot.slane %v922, %v935
        %v937 = vcombine.low %v929, %v936
        %v938 = vcombine.low %v872, %v871
        %v939 = vcombine.low %v880, %v888
        %v941 = vunpack.c.l.s4 1983009808
        %v942 = vunpack.c.0.s8 %v941
        %v943 = vlaneseq
        %v944 = vshrl.u32 %v943, 7
        %v945 = vsub.s32 %v942, %v944
        %v946 = vrot.slane %v938, %v945
        %v948 = vunpack.c.l.s4 1983009808
        %v949 = vunpack.c.0.s8 %v948
        %v950 = vlaneseq
        %v951 = vshrl.u32 %v950, 7
        %v952 = vsub.s32 %v949, %v951
        %v953 = vrot.slane %v939, %v952
        %v954 = vcombine.low %v946, %v953
        %v955 = vcombine.low %v887, %v896
        %v956 = vcombine.low %v904, %v903
        %v958 = vunpack.c.l.s4 1983009808
        %v959 = vunpack.c.0.s8 %v958
        %v960 = vlaneseq
        %v961 = vshrl.u32 %v960, 7
        %v962 = vsub.s32 %v959, %v961
        %v963 = vrot.slane %v955, %v962
        %v965 = vunpack.c.l.s4 1983009808
        %v966 = vunpack.c.0.s8 %v965
        %v967 = vlaneseq
        %v968 = vshrl.u32 %v967, 7
        %v969 = vsub.s32 %v966, %v968
        %v970 = vrot.slane %v956, %v969
        %v971 = vcombine.low %v963, %v970
        %v972 = vcombine.low %v912, %v920
        %v974 = vunpack.c.l.s4 1983009808
        %v975 = vunpack.c.0.s8 %v974
        %v976 = vlaneseq
        %v977 = vshrl.u32 %v976, 7
        %v978 = vsub.s32 %v975, %v977
        %v979 = vrot.slane %v972, %v978
        %v981 = vunpack.c.l.s4 1983009808
        %v982 = vunpack.c.0.s8 %v981
        %v983 = vlaneseq
        %v984 = vshrl.u32 %v983, 7
        %v985 = vsub.s32 %v982, %v984
        %v986 = vrot.slane %v919, %v985
        %v987 = vcombine.low %v979, %v986
        %v988 = vsel %vm503, %v937, 0
        %v990 = vsel %vm503, %v954, 0
        %v992 = vsel %vm503, %v971, 0
        %v994 = vsel %vm503, %v987, 0
        %996 = vmatprep.subr.mxu0 0.0
        %997 = vmatpush1.msra.mxu0 %v313
        %998 = vmatprep.subr.mxu0 0.0
        %999 = vmatpush1.msra.mxu0 %v314
        %1000 = vmatprep.subr.mxu0 0.0
        %1001 = vmatpush1.msra.mxu0 0.0
        %1002 = vmatprep.subr.mxu0 0.0
        %1003 = vmatpush1.msra.mxu0 0.0
        %1004 = vmatprep.subr.mxu0 0.0
        %1005 = vmatpush1.msra.mxu0 0.0
        %1006 = vmatprep.subr.mxu0 0.0
        %1007 = vmatpush1.msra.mxu0 0.0
        %1008 = vmatprep.subr.mxu0 0.0
        %1009 = vmatpush1.msra.mxu0 0.0
        %1010 = vmatprep.subr.mxu0 0.0
        %1011 = vmatpush1.msra.mxu0 0.0
        %1012 = vmatprep.subr.mxu0 0.0
        %1013 = vmatpush1.msra.mxu0 0.0
        %1014 = vmatprep.subr.mxu0 0.0
        %1015 = vmatpush1.msra.mxu0 0.0
        %1016 = vmatprep.subr.mxu0 0.0
        %1017 = vmatpush1.msra.mxu0 0.0
        %1018 = vmatprep.subr.mxu0 0.0
        %1019 = vmatpush1.msra.mxu0 0.0
        %1020 = vmatprep.subr.mxu0 0.0
        %1021 = vmatpush1.msra.mxu0 0.0
        %1022 = vmatprep.subr.mxu0 0.0
        %1023 = vmatpush1.msra.mxu0 0.0
        %1024 = vmatprep.subr.mxu0 0.0
        %1025 = vmatpush1.msra.mxu0 0.0
        %1026 = vmatprep.subr.mxu0 0.0
        %1027 = vmatpush1.msra.mxu0 0.0
        %1028 = vmatprep.subr.mxu0 0.0
        %1029 = vmatpush1.msra.mxu0 0.0
        %1030 = vmatprep.subr.mxu0 0.0
        %1031 = vmatpush1.msra.mxu0 0.0
        %1032 = vmatprep.subr.mxu0 0.0
        %1033 = vmatpush1.msra.mxu0 0.0
        %1034 = vmatprep.subr.mxu0 0.0
        %1035 = vmatpush1.msra.mxu0 0.0
        %1036 = vmatprep.subr.mxu0 0.0
        %1037 = vmatpush1.msra.mxu0 0.0
        %1038 = vmatprep.subr.mxu0 0.0
        %1039 = vmatpush1.msra.mxu0 0.0
        %1040 = vmatprep.subr.mxu0 0.0
        %1041 = vmatpush1.msra.mxu0 0.0
        %1042 = vmatprep.subr.mxu0 0.0
        %1043 = vmatpush1.msra.mxu0 0.0
        %1044 = vmatprep.subr.mxu0 0.0
        %1045 = vmatpush1.msra.mxu0 0.0
        %1046 = vmatprep.subr.mxu0 0.0
        %1047 = vmatpush1.msra.mxu0 0.0
        %1048 = vmatprep.subr.mxu0 0.0
        %1049 = vmatpush1.msra.mxu0 0.0
        %1050 = vmatprep.subr.mxu0 0.0
        %1051 = vmatpush1.msra.mxu0 0.0
        %1052 = vmatprep.subr.mxu0 0.0
        %1053 = vmatpush1.msra.mxu0 0.0
        %1054 = vmatprep.subr.mxu0 0.0
        %1055 = vmatpush1.msra.mxu0 0.0
        %1056 = vmatprep.subr.mxu0 0.0
        %1057 = vmatpush1.msra.mxu0 0.0
        %1058 = vmatprep.subr.mxu0 0.0
        %1059 = vmatpush1.msra.mxu0 0.0
        %1060 = vmatprep.mubr.f32.mxu0 0.0
        %1061 = vmatmul.mubr.f32.gmra.mrb[0].mxu0 %v988
        %v1062 = vpop.f32.mrb[0].mxu0
        %v1063 = vadd.f32 0.0, %v1062
        %v1064 = vpop.f32.mrb[0].mxu0
        %1065 = vmatprep.mubr.f32.mxu0 0.0
        %1066 = vmatmul.mubr.f32.gmra.mrb[0].mxu0 %v990
        %v1067 = vpop.f32.mrb[0].mxu0
        %v1068 = vadd.f32 0.0, %v1067
        %v1069 = vpop.f32.mrb[0].mxu0
        %1070 = vmatprep.mubr.f32.mxu0 0.0
        %1071 = vmatmul.mubr.f32.gmra.mrb[0].mxu0 %v992
        %v1072 = vpop.f32.mrb[0].mxu0
        %v1073 = vadd.f32 0.0, %v1072
        %v1074 = vpop.f32.mrb[0].mxu0
        %1075 = vmatprep.mubr.f32.mxu0 0.0
        %1076 = vmatmul.mubr.f32.gmra.mrb[0].mxu0 %v994
        %v1077 = vpop.f32.mrb[0].mxu0
        %v1078 = vadd.f32 0.0, %v1077
        %v1079 = vpop.f32.mrb[0].mxu0
        %1080 = vdwg.mxu0
        %v1085 = vcombine.high %v1063, %v1063
        %v1087 = vunpack.c.l.s4 1983009808
        %v1088 = vunpack.c.0.s8 %v1087
        %v1089 = vlaneseq
        %v1090 = vshrl.u32 %v1089, 7
        %v1091 = vsub.s32 %v1088, %v1090
        %v1092 = vrot.slane %v1063, %v1091
        %v1094 = vunpack.c.l.s4 1983009808
        %v1095 = vunpack.c.0.s8 %v1094
        %v1096 = vlaneseq
        %v1097 = vshrl.u32 %v1096, 7
        %v1098 = vsub.s32 %v1095, %v1097
        %v1099 = vrot.slane %v1085, %v1098
        %v1100 = vcombine.high %v1092, %v1092
        %v1101 = vcombine.high %v1099, %v1099
        %v1102 = vcombine.high %v1068, %v1068
        %v1104 = vunpack.c.l.s4 1983009808
        %v1105 = vunpack.c.0.s8 %v1104
        %v1106 = vlaneseq
        %v1107 = vshrl.u32 %v1106, 7
        %v1108 = vsub.s32 %v1105, %v1107
        %v1109 = vrot.slane %v1068, %v1108
        %v1111 = vunpack.c.l.s4 1983009808
        %v1112 = vunpack.c.0.s8 %v1111
        %v1113 = vlaneseq
        %v1114 = vshrl.u32 %v1113, 7
        %v1115 = vsub.s32 %v1112, %v1114
        %v1116 = vrot.slane %v1102, %v1115
        %v1117 = vcombine.high %v1109, %v1109
        %v1118 = vcombine.high %v1116, %v1116
        %v1119 = vcombine.high %v1073, %v1073
        %v1121 = vunpack.c.l.s4 1983009808
        %v1122 = vunpack.c.0.s8 %v1121
        %v1123 = vlaneseq
        %v1124 = vshrl.u32 %v1123, 7
        %v1125 = vsub.s32 %v1122, %v1124
        %v1126 = vrot.slane %v1073, %v1125
        %v1128 = vunpack.c.l.s4 1983009808
        %v1129 = vunpack.c.0.s8 %v1128
        %v1130 = vlaneseq
        %v1131 = vshrl.u32 %v1130, 7
        %v1132 = vsub.s32 %v1129, %v1131
        %v1133 = vrot.slane %v1119, %v1132
        %v1134 = vcombine.high %v1126, %v1126
        %v1135 = vcombine.high %v1133, %v1133
        %v1136 = vcombine.high %v1078, %v1078
        %v1138 = vunpack.c.l.s4 1983009808
        %v1139 = vunpack.c.0.s8 %v1138
        %v1140 = vlaneseq
        %v1141 = vshrl.u32 %v1140, 7
        %v1142 = vsub.s32 %v1139, %v1141
        %v1143 = vrot.slane %v1078, %v1142
        %v1145 = vunpack.c.l.s4 1983009808
        %v1146 = vunpack.c.0.s8 %v1145
        %v1147 = vlaneseq
        %v1148 = vshrl.u32 %v1147, 7
        %v1149 = vsub.s32 %v1146, %v1148
        %v1150 = vrot.slane %v1136, %v1149
        %v1151 = vcombine.high %v1143, %v1143
        %v1167 = vmul.f32 %v1092, %v1092
        %v1168 = vmul.f32 %v1100, %v1100
        %v1169 = vmul.f32 %v1099, %v1099
        %v1170 = vsub.f32 %v1116, %v1167
        %v1171 = vsub.f32 %v1118, %v1168
        %v1172 = vsub.f32 %v1126, %v1169
        %v1173 = vmul.f32 %v1101, %v1101
        %v1174 = vmul.f32 %v1109, %v1109
        %v1175 = vmul.f32 %v1117, %v1117
        %v1176 = vsub.f32 %v1134, %v1173
        %v1177 = vsub.f32 %v1133, %v1174
        %v1178 = vsub.f32 %v1135, %v1175
        %v1179 = vmul.f32 %v1092, %v1101
        %v1180 = vmul.f32 %v1100, %v1109
        %v1181 = vmul.f32 %v1099, %v1117
        %v1182 = vsub.f32 %v1143, %v1179
        %v1183 = vsub.f32 %v1151, %v1180
        %v1184 = vsub.f32 %v1150, %v1181
        %s1185 = sld [smem:[#allocation4]]
        %v1186 = vmul.f32 %v1182, 2.0
        %v1187 = vmul.f32 %v1183, 2.0
        %v1188 = vmul.f32 %v1184, 2.0
        %v1189 = vstv %s1185
        %v1190 = vadd.f32 %v1186, %v1189
        %v1191 = vadd.f32 %v1187, %v1189
        %v1192 = vadd.f32 %v1188, %v1189
        %v1193 = vadd.f32 %v1170, %v1176
        %v1194 = vadd.f32 %v1171, %v1177
        %v1195 = vadd.f32 %v1172, %v1178
        %v1196 = vadd.f32 %v1193, %v1189
        %v1197 = vadd.f32 %v1194, %v1189
        %v1198 = vadd.f32 %v1195, %v1189
        %v1199 = vrcp.pop %v1196
        %v1200 = vrcp.pop %v1197
        %v1201 = vrcp.pop %v1198
        %v1202 = vmul.f32 %v1196, %v1199
        %v1203 = vmul.f32 %v1197, %v1200
        %v1204 = vmul.f32 %v1198, %v1201
        %v1205 = vsub.f32 2.0, %v1202
        %v1206 = vsub.f32 2.0, %v1203
        %v1207 = vsub.f32 2.0, %v1204
        %v1208 = vmul.f32 %v1199, %v1205
        %v1209 = vmul.f32 %v1200, %v1206
        %v1210 = vmul.f32 %v1201, %v1207
        %v1211 = vmul.f32 %v1190, %v1208
        %v1212 = vmul.f32 %v1191, %v1209
        %v1213 = vmul.f32 %v1192, %v1210
        %v1217 = vcombine.low %v1211, %v1212
        %v1219 = vunpack.c.l.s4 1983009808
        %v1220 = vunpack.c.0.s8 %v1219
        %v1221 = vlaneseq
        %v1222 = vshrl.u32 %v1221, 7
        %v1223 = vsub.s32 %v1220, %v1222
        %v1224 = vrot.slane %v1217, %v1223
        %v1226 = vunpack.c.l.s4 1983009808
        %v1227 = vunpack.c.0.s8 %v1226
        %v1228 = vlaneseq
        %v1229 = vshrl.u32 %v1228, 7
        %v1230 = vsub.s32 %v1227, %v1229
        %v1231 = vrot.slane %v1213, %v1230
        %v1232 = vcombine.low %v1224, %v1231
        %vm1234 = vcmask 46080
        %v1235 = vsel %vm1234, %v1232, 0.0
        %1236 = vadd.xlane.f32.xlu0 %v1235
        %v1237 = vpop.xlane.xlu0 %1236
        %v1238 = vrot.slane %v1237, 4
        %v1239 = vadd.f32 %v1237, %v1238
        %v1240 = vrot.slane %v1239, 2
        %v1241 = vadd.f32 %v1239, %v1240
        %v1242 = vrot.slane %v1241, 1
        %v1243 = vadd.f32 %v1241, %v1242
        %s1244 = vtos %v1243
        %v1245 = vstv %s1244
        %1246 = vst [vmem:[%s306] sm:$0xff] %v1245
        %s1247 = sand.u32 %s168, 1
        %s1248 = scalar_lea.sflag [#allocation7], %s1247
        %s1249 = sand.u32 %s168, 1
        %s1250 = smul.addr %s1249, 8
        %s1251 = scalar_lea.vmem [#allocation10], %s1250
        // Predicated region
        $region49: #{tpu_custom_call.1} parent=39 // pred_check
          %p1252 = pneg %p178
        $region50: #{tpu_custom_call.1} parent=39 // pred_check_branch
          %1254 = sbr.rel (%p1252) target = $region52
        $region51: #{tpu_custom_call.1} parent=39 // pred_region
          %s1256 = ssub.s32 128, 128
          %1257 = vsyncadd %s1248, %s1256
          %s1258 = smul.addr %s31, 3
          %s1259 = sadd.s32 %s32, %s1258
          %s1260 = smul.addr %s1259, 128
          %s1261 = scalar_lea.hbm %s6, %s1260
          %s1263 = sshll.u32 %s1251, 4
          %s1264 = int_to_ptr.vmem [resolvable:$true] %s1263
          %1266 = dma.vmem_to_hbm [thread:$0]  %s1264, 128, %s1261, %s1248
        $region52: #{tpu_custom_call.1} parent=39 // pred_fallthru
          _
      $region40: #{tpu_custom_call.1} parent=5 // pred_fallthru
        _
      %p1267 = scmp.le.s32.totalorder 2, %s22
      // Predicated region
      $region53: #{tpu_custom_call.1} parent=5 // pred_check
        %p1268 = pneg %p1267
      $region54: #{tpu_custom_call.1} parent=5 // pred_check_branch
        %1270 = sbr.rel (%p1268) target = $region56
      $region55: #{tpu_custom_call.1} parent=5 // pred_region
        %s1271 = ssub.s32 %s22, 2
        // Predicated region
        $region57: #{tpu_custom_call.1} parent=55 // pred_check
          %p1272 = pneg %p184
        $region58: #{tpu_custom_call.1} parent=55 // pred_check_branch
          %1274 = sbr.rel (%p1272) target = $region60
        $region59: #{tpu_custom_call.1} parent=55 // pred_region
          %s1275 = sand.u32 %s169, 1
          %s1276 = scalar_lea.sflag [#allocation7], %s1275
          %s1277 = sand.u32 %s169, 1
          %s1278 = smul.addr %s1277, 8
          %s1279 = scalar_lea.vmem [#allocation10], %s1278
          %1280 = dma.done %s1276, 128
        $region60: #{tpu_custom_call.1} parent=55 // pred_fallthru
          _
      $region56: #{tpu_custom_call.1} parent=5 // pred_fallthru
        _
    $region6: #{tpu_custom_call.1} parent=1 // loop_footer
      %s26 = sadd.s32 1, %s22
    $region7: #{tpu_custom_call.1} parent=1 // loop_footer_branch
      %21 = sbr.rel target = $region3
    $region8: #{tpu_custom_call.1} parent=1 // loop_exit
      _
    %1281 = vsyncpa [#allocation6], 1
    %s1282 = scalar_lea.sflag [#allocation6], 1
    %1283 = vsyncpa %s1282, 1
    %1284 = vsyncpa [#allocation9], 1
    %s1285 = scalar_lea.sflag [#allocation9], 1
    %1286 = vsyncpa %s1285, 1
    %1287 = vsyncpa [#allocation7], 1
    %s1288 = scalar_lea.sflag [#allocation7], 1
    %1289 = vsyncpa %s1288, 1

</llo_original>
